<compile_context>
chip_gen: v7x
topology: tpu7x:2x2x1
jax: 0.10.0
libtpu: 0.0.40
codegen_flags: <defaults>
</compile_context>

<pallas_src>
import jax
import jax.numpy as jnp
from jax.experimental import pallas as pl
from jax.experimental.pallas import tpu as pltpu


def centre_kernel(x_ref, w_enc_ref, b_enc_ref, w_rt_ref, mem_ref,
                  w_dec_ref, b_dec_ref, w_syn_ref,
                  enc_out, ana_out, route_out, dec_out, syn_out,
                  dec_scratch):
    j = pl.program_id(1)   # synthesiser output-column tile

    # The front of the pipeline (encoder..decoder) only depends on the batch
    # tile, so run it once per batch tile (at j == 0) and stash the decoded
    # activations in a VMEM scratch that persists across the j axis.
    @pl.when(j == 0)
    def _front():
        x = x_ref[...]                                            # [TB, D] f32

        # --- encoder: dense (bf16 weights, f32 accumulate) + ReLU ----------
        enc = jnp.dot(x.astype(jnp.bfloat16), w_enc_ref[...],
                      preferred_element_type=jnp.float32) + b_enc_ref[...]
        enc = jnp.maximum(enc, 0.0)                               # [TB, Hid]

        # --- analyser: feature normalisation (layernorm-style stats) -------
        mu = jnp.mean(enc, axis=-1, keepdims=True)
        var = jnp.mean((enc - mu) ** 2, axis=-1, keepdims=True)
        ana = (enc - mu) * jax.lax.rsqrt(var + 1e-6)              # [TB, Hid]

        # --- router: softmax over routes ------------------------------------
        logits = jnp.dot(ana.astype(jnp.bfloat16), w_rt_ref[...],
                         preferred_element_type=jnp.float32)      # [TB, R]
        m = jnp.max(logits, axis=-1, keepdims=True)
        e = jnp.exp(logits - m)
        route = e * pl.reciprocal(jnp.sum(e, axis=-1, keepdims=True),
                                  approx=True)

        # --- store: soft memory read (routes x memory slots) ----------------
        retrieved = jnp.dot(route.astype(jnp.bfloat16), mem_ref[...],
                            preferred_element_type=jnp.float32)   # [TB, Hid]

        # --- decoder: dense + ReLU back to input width ----------------------
        dec = jnp.dot((ana + retrieved).astype(jnp.bfloat16), w_dec_ref[...],
                      preferred_element_type=jnp.float32) + b_dec_ref[...]
        dec = jnp.maximum(dec, 0.0)                               # [TB, D]

        enc_out[...] = enc
        ana_out[...] = ana
        route_out[...] = route
        dec_out[...] = dec
        dec_scratch[...] = dec.astype(jnp.bfloat16)

    # --- synthesiser: dense + tanh, tiled over output columns (axis j) -----
    syn_out[...] = jnp.tanh(
        jnp.dot(dec_scratch[...], w_syn_ref[...],
                preferred_element_type=jnp.float32))              # [TB, TN]


def centre_forward(x_nchw, params, *, tb=8, tn=None):
    B, C, H, W = x_nchw.shape
    D = C * H * W
    Hid = params["w_enc"].shape[1]
    R = params["w_rt"].shape[1]

    if tn is None:
        tn = 256 if D % 256 == 0 else (128 if D % 128 == 0 else D)

    # Pad batch to a multiple of tb (f32 sublane count) -> dense vreg tiles,
    # unmasked stores.  Padded rows are sliced off after the call.
    B_pad = ((B + tb - 1) // tb) * tb
    x = x_nchw.reshape(B, D).astype(jnp.float32)
    if B_pad != B:
        x = jnp.pad(x, ((0, B_pad - B), (0, 0)))

    # bf16 weights (MXU-native, half the HBM traffic); f32 biases.
    w_enc = params["w_enc"].astype(jnp.bfloat16)
    w_rt = params["w_rt"].astype(jnp.bfloat16)
    memory = params["memory"].astype(jnp.bfloat16)
    w_dec = params["w_dec"].astype(jnp.bfloat16)
    w_syn = params["w_syn"].astype(jnp.bfloat16)
    b_enc = params["b_enc"].astype(jnp.float32)
    b_dec = params["b_dec"].astype(jnp.float32)

    nb = B_pad // tb
    nn = D // tn

    def resident(shape):
        return pl.BlockSpec(shape, lambda i, j: (0,) * len(shape))

    in_specs = [
        pl.BlockSpec((tb, D), lambda i, j: (i, 0)),      # x: batch-tiled
        resident((D, Hid)),                              # w_enc   (resident)
        resident((1, Hid)),                              # b_enc
        resident((Hid, R)),                              # w_rt
        resident((R, Hid)),                              # memory
        resident((Hid, D)),                              # w_dec
        resident((1, D)),                                # b_dec
        pl.BlockSpec((D, tn), lambda i, j: (0, j)),      # w_syn: N-tiled stream
    ]
    out_specs = [
        pl.BlockSpec((tb, Hid), lambda i, j: (i, 0)),    # encoded
        pl.BlockSpec((tb, Hid), lambda i, j: (i, 0)),    # analysed
        pl.BlockSpec((tb, R), lambda i, j: (i, 0)),      # routed
        pl.BlockSpec((tb, D), lambda i, j: (i, 0)),      # decoded
        pl.BlockSpec((tb, tn), lambda i, j: (i, j)),     # synthesised
    ]
    out_shapes = (
        jax.ShapeDtypeStruct((B_pad, Hid), jnp.float32),
        jax.ShapeDtypeStruct((B_pad, Hid), jnp.float32),
        jax.ShapeDtypeStruct((B_pad, R), jnp.float32),
        jax.ShapeDtypeStruct((B_pad, D), jnp.float32),
        jax.ShapeDtypeStruct((B_pad, D), jnp.float32),
    )

    # Scoped-VMEM limit sized to the real footprint (v7x: only 64 MiB physical).
    weight_bytes = (D * Hid + Hid * R + R * Hid + Hid * D) * 2 + (Hid + D) * 4
    block_bytes = (2 * (D * tn * 2 + tb * D * 4)                      # w_syn + x (dbl-buf)
                   + 2 * tb * (2 * Hid + R + D + tn) * 4              # outputs (dbl-buf)
                   + tb * D * 2)                                      # dec scratch
    vmem_limit = int(min(max(2 * (weight_bytes + block_bytes), 8 << 20), 48 << 20))

    enc, ana, route, dec, syn = pl.pallas_call(
        centre_kernel,
        out_shape=out_shapes,
        grid_spec=pltpu.PrefetchScalarGridSpec(
            num_scalar_prefetch=0,
            grid=(nb, nn),
            in_specs=in_specs,
            out_specs=out_specs,
            scratch_shapes=[pltpu.VMEM((tb, D), jnp.bfloat16)],
        ),
        compiler_params=pltpu.CompilerParams(
            dimension_semantics=("parallel", "arbitrary"),
            vmem_limit_bytes=vmem_limit,
        ),
    )(x, w_enc, b_enc, w_rt, memory, w_dec, b_dec, w_syn)

    return {
        "encoded": enc[:B],
        "analysed": ana[:B],
        "routed": route[:B],
        "decoded": dec[:B],
        "synthesised": syn[:B].reshape(B, C, H, W),
    }


def make_params(key, D, Hid, R):
    ks = jax.random.split(key, 6)
    scale = 0.05
    return {
        "w_enc": scale * jax.random.normal(ks[0], (D, Hid), jnp.float32),
        "b_enc": jnp.zeros((1, Hid), jnp.float32),
        "w_rt": scale * jax.random.normal(ks[1], (Hid, R), jnp.float32),
        "memory": scale * jax.random.normal(ks[2], (R, Hid), jnp.float32),
        "w_dec": scale * jax.random.normal(ks[3], (Hid, D), jnp.float32),
        "b_dec": jnp.zeros((1, D), jnp.float32),
        "w_syn": scale * jax.random.normal(ks[4], (D, D), jnp.float32),
    }


if __name__ == "__main__":
    key = jax.random.PRNGKey(0)
    k_x, k_p = jax.random.split(key)

    B, C, H, W = 2, 4, 16, 16          # NCHW, as in the PyTorch module
    D = C * H * W                      # 1024
    Hid = 128                          # hidden width (lane-aligned)
    R = 128                            # number of routes / memory slots

    x = jax.random.normal(k_x, (B, C, H, W), jnp.float32)
    params = make_params(k_p, D, Hid, R)

    out = centre_forward(x, params)
    jax.block_until_ready(out)

    assert out["encoded"].shape == (B, Hid)
    assert out["analysed"].shape == (B, Hid)
    assert out["routed"].shape == (B, R)
    assert out["decoded"].shape == (B, D)
    assert out["synthesised"].shape == (B, C, H, W)
    for v in out.values():
        assert bool(jnp.all(jnp.isfinite(v)))

    print("KERNEL_OK")
</pallas_src>

<mosaic_0001>
module attributes {stable_mosaic.version = 11 : i64} {
  func.func @centre_kernel(%arg0: i32, %arg1: i32, %arg2: memref<8x1024xf32, #tpu.memory_space<vmem>>, %arg3: memref<1024x128xbf16, #tpu.memory_space<vmem>>, %arg4: memref<1x128xf32, #tpu.memory_space<vmem>>, %arg5: memref<128x128xbf16, #tpu.memory_space<vmem>>, %arg6: memref<128x128xbf16, #tpu.memory_space<vmem>>, %arg7: memref<128x1024xbf16, #tpu.memory_space<vmem>>, %arg8: memref<1x1024xf32, #tpu.memory_space<vmem>>, %arg9: memref<1024x256xbf16, #tpu.memory_space<vmem>>, %arg10: memref<8x128xf32, #tpu.memory_space<vmem>>, %arg11: memref<8x128xf32, #tpu.memory_space<vmem>>, %arg12: memref<8x128xf32, #tpu.memory_space<vmem>>, %arg13: memref<8x1024xf32, #tpu.memory_space<vmem>>, %arg14: memref<8x256xf32, #tpu.memory_space<vmem>>, %arg15: memref<8x1024xbf16, #tpu.memory_space<vmem>>) attributes {dimension_semantics = [#tpu.dimension_semantics<parallel>, #tpu.dimension_semantics<arbitrary>], iteration_bounds = array<i64: 1, 4>, scalar_prefetch = 0 : i64, scratch_operands = 1 : i64, tpu.core_type = #tpu.core_type<tc>, window_params = [{transform_indices = @transform_0, window_bounds = array<i64: 8, 1024>}, {pipeline_mode = #tpu.pipeline_mode<synchronous>, transform_indices = @transform_1, window_bounds = array<i64: 1024, 128>}, {pipeline_mode = #tpu.pipeline_mode<synchronous>, transform_indices = @transform_2, window_bounds = array<i64: 1, 128>}, {pipeline_mode = #tpu.pipeline_mode<synchronous>, transform_indices = @transform_3, window_bounds = array<i64: 128, 128>}, {pipeline_mode = #tpu.pipeline_mode<synchronous>, transform_indices = @transform_4, window_bounds = array<i64: 128, 128>}, {pipeline_mode = #tpu.pipeline_mode<synchronous>, transform_indices = @transform_5, window_bounds = array<i64: 128, 1024>}, {pipeline_mode = #tpu.pipeline_mode<synchronous>, transform_indices = @transform_6, window_bounds = array<i64: 1, 1024>}, {transform_indices = @transform_7, window_bounds = array<i64: 1024, 256>}, {transform_indices = @transform_8, window_bounds = array<i64: 8, 128>}, {transform_indices = @transform_9, window_bounds = array<i64: 8, 128>}, {transform_indices = @transform_10, window_bounds = array<i64: 8, 128>}, {transform_indices = @transform_11, window_bounds = array<i64: 8, 1024>}, {transform_indices = @transform_12, window_bounds = array<i64: 8, 256>}]} {
    %c0_i32 = arith.constant 0 : i32
    %0 = arith.cmpi eq, %arg1, %c0_i32 : i32
    %1 = arith.extui %0 : i1 to i32
    %c0_i32_0 = arith.constant 0 : i32
    %2 = arith.cmpi ne, %1, %c0_i32_0 : i32
    scf.if %2 {
      %c0_6 = arith.constant 0 : index
      %c0_7 = arith.constant 0 : index
      %8 = vector.load %arg2[%c0_6, %c0_7] : memref<8x1024xf32, #tpu.memory_space<vmem>>, vector<8x1024xf32>
      %9 = arith.truncf %8 : vector<8x1024xf32> to vector<8x1024xbf16>
      %c0_8 = arith.constant 0 : index
      %c0_9 = arith.constant 0 : index
      %10 = vector.load %arg3[%c0_8, %c0_9] : memref<1024x128xbf16, #tpu.memory_space<vmem>>, vector<1024x128xbf16>
      %cst_10 = arith.constant dense<0.000000e+00> : vector<8x128xf32>
      %11 = tpu.matmul %9, %10, %cst_10 {dimension_numbers = #tpu.dot_dimension_numbers<[1], [0], [0], [1], [0, 0, 1, 1], [], []>} : vector<8x1024xbf16>, vector<1024x128xbf16>, vector<8x128xf32> -> vector<8x128xf32>
      %c0_11 = arith.constant 0 : index
      %c0_12 = arith.constant 0 : index
      %12 = vector.load %arg4[%c0_11, %c0_12] : memref<1x128xf32, #tpu.memory_space<vmem>>, vector<1x128xf32>
      %13 = vector.broadcast %12 : vector<1x128xf32> to vector<8x128xf32>
      %14 = arith.addf %11, %13 : vector<8x128xf32>
      %cst_13 = arith.constant 0.000000e+00 : f32
      %15 = vector.broadcast %cst_13 : f32 to vector<8x128xf32>
      %16 = arith.maximumf %14, %15 : vector<8x128xf32>
      %cst_14 = arith.constant dense<0.000000e+00> : vector<8xf32>
      %17 = vector.multi_reduction <add>, %16, %cst_14 [1] : vector<8x128xf32> to vector<8xf32>
      %18 = vector.shape_cast %17 : vector<8xf32> to vector<8x1xf32>
      %cst_15 = arith.constant 1.280000e+02 : f32
      %19 = vector.broadcast %cst_15 : f32 to vector<8x1xf32>
      %20 = arith.divf %18, %19 : vector<8x1xf32>
      %21 = vector.broadcast %20 : vector<8x1xf32> to vector<8x128xf32>
      %22 = arith.subf %16, %21 : vector<8x128xf32>
      %23 = arith.mulf %22, %22 : vector<8x128xf32>
      %cst_16 = arith.constant dense<0.000000e+00> : vector<8xf32>
      %24 = vector.multi_reduction <add>, %23, %cst_16 [1] : vector<8x128xf32> to vector<8xf32>
      %25 = vector.shape_cast %24 : vector<8xf32> to vector<8x1xf32>
      %cst_17 = arith.constant 1.280000e+02 : f32
      %26 = vector.broadcast %cst_17 : f32 to vector<8x1xf32>
      %27 = arith.divf %25, %26 : vector<8x1xf32>
      %28 = vector.broadcast %20 : vector<8x1xf32> to vector<8x128xf32>
      %29 = arith.subf %16, %28 : vector<8x128xf32>
      %cst_18 = arith.constant 9.99999997E-7 : f32
      %30 = vector.broadcast %cst_18 : f32 to vector<8x1xf32>
      %31 = arith.addf %27, %30 : vector<8x1xf32>
      %32 = math.rsqrt %31 : vector<8x1xf32>
      %33 = vector.broadcast %32 : vector<8x1xf32> to vector<8x128xf32>
      %34 = arith.mulf %29, %33 : vector<8x128xf32>
      %35 = arith.truncf %34 : vector<8x128xf32> to vector<8x128xbf16>
      %c0_19 = arith.constant 0 : index
      %c0_20 = arith.constant 0 : index
      %36 = vector.load %arg5[%c0_19, %c0_20] : memref<128x128xbf16, #tpu.memory_space<vmem>>, vector<128x128xbf16>
      %cst_21 = arith.constant dense<0.000000e+00> : vector<8x128xf32>
      %37 = tpu.matmul %35, %36, %cst_21 {dimension_numbers = #tpu.dot_dimension_numbers<[1], [0], [0], [1], [0, 0, 1, 1], [], []>} : vector<8x128xbf16>, vector<128x128xbf16>, vector<8x128xf32> -> vector<8x128xf32>
      %cst_22 = arith.constant dense<0xFF800000> : vector<8xf32>
      %38 = vector.multi_reduction <maximumf>, %37, %cst_22 [1] : vector<8x128xf32> to vector<8xf32>
      %39 = vector.shape_cast %38 : vector<8xf32> to vector<8x1xf32>
      %40 = vector.broadcast %39 : vector<8x1xf32> to vector<8x128xf32>
      %41 = arith.subf %37, %40 : vector<8x128xf32>
      %42 = math.exp %41 : vector<8x128xf32>
      %cst_23 = arith.constant dense<0.000000e+00> : vector<8xf32>
      %43 = vector.multi_reduction <add>, %42, %cst_23 [1] : vector<8x128xf32> to vector<8xf32>
      %44 = vector.shape_cast %43 : vector<8xf32> to vector<8x1xf32>
      %45 = tpu.reciprocal %44 {approx = true} : vector<8x1xf32> -> vector<8x1xf32>
      %46 = vector.broadcast %45 : vector<8x1xf32> to vector<8x128xf32>
      %47 = arith.mulf %42, %46 : vector<8x128xf32>
      %48 = arith.truncf %47 : vector<8x128xf32> to vector<8x128xbf16>
      %c0_24 = arith.constant 0 : index
      %c0_25 = arith.constant 0 : index
      %49 = vector.load %arg6[%c0_24, %c0_25] : memref<128x128xbf16, #tpu.memory_space<vmem>>, vector<128x128xbf16>
      %cst_26 = arith.constant dense<0.000000e+00> : vector<8x128xf32>
      %50 = tpu.matmul %48, %49, %cst_26 {dimension_numbers = #tpu.dot_dimension_numbers<[1], [0], [0], [1], [0, 0, 1, 1], [], []>} : vector<8x128xbf16>, vector<128x128xbf16>, vector<8x128xf32> -> vector<8x128xf32>
      %51 = arith.addf %34, %50 : vector<8x128xf32>
      %52 = arith.truncf %51 : vector<8x128xf32> to vector<8x128xbf16>
      %c0_27 = arith.constant 0 : index
      %c0_28 = arith.constant 0 : index
      %53 = vector.load %arg7[%c0_27, %c0_28] : memref<128x1024xbf16, #tpu.memory_space<vmem>>, vector<128x1024xbf16>
      %cst_29 = arith.constant dense<0.000000e+00> : vector<8x1024xf32>
      %54 = tpu.matmul %52, %53, %cst_29 {dimension_numbers = #tpu.dot_dimension_numbers<[1], [0], [0], [1], [0, 0, 1, 1], [], []>} : vector<8x128xbf16>, vector<128x1024xbf16>, vector<8x1024xf32> -> vector<8x1024xf32>
      %c0_30 = arith.constant 0 : index
      %c0_31 = arith.constant 0 : index
      %55 = vector.load %arg8[%c0_30, %c0_31] : memref<1x1024xf32, #tpu.memory_space<vmem>>, vector<1x1024xf32>
      %56 = vector.broadcast %55 : vector<1x1024xf32> to vector<8x1024xf32>
      %57 = arith.addf %54, %56 : vector<8x1024xf32>
      %cst_32 = arith.constant 0.000000e+00 : f32
      %58 = vector.broadcast %cst_32 : f32 to vector<8x1024xf32>
      %59 = arith.maximumf %57, %58 : vector<8x1024xf32>
      %c0_33 = arith.constant 0 : index
      %c0_34 = arith.constant 0 : index
      %60 = vector.load %arg10[%c0_33, %c0_34] : memref<8x128xf32, #tpu.memory_space<vmem>>, vector<8x128xf32>
      tpu.vector_store %arg10[%c0_33, %c0_34], %16 {strides = array<i32>} : memref<8x128xf32, #tpu.memory_space<vmem>>, vector<8x128xf32>,
      %c0_35 = arith.constant 0 : index
      %c0_36 = arith.constant 0 : index
      %61 = vector.load %arg11[%c0_35, %c0_36] : memref<8x128xf32, #tpu.memory_space<vmem>>, vector<8x128xf32>
      tpu.vector_store %arg11[%c0_35, %c0_36], %34 {strides = array<i32>} : memref<8x128xf32, #tpu.memory_space<vmem>>, vector<8x128xf32>,
      %c0_37 = arith.constant 0 : index
      %c0_38 = arith.constant 0 : index
      %62 = vector.load %arg12[%c0_37, %c0_38] : memref<8x128xf32, #tpu.memory_space<vmem>>, vector<8x128xf32>
      tpu.vector_store %arg12[%c0_37, %c0_38], %47 {strides = array<i32>} : memref<8x128xf32, #tpu.memory_space<vmem>>, vector<8x128xf32>,
      %c0_39 = arith.constant 0 : index
      %c0_40 = arith.constant 0 : index
      %63 = vector.load %arg13[%c0_39, %c0_40] : memref<8x1024xf32, #tpu.memory_space<vmem>>, vector<8x1024xf32>
      tpu.vector_store %arg13[%c0_39, %c0_40], %59 {strides = array<i32>} : memref<8x1024xf32, #tpu.memory_space<vmem>>, vector<8x1024xf32>,
      %64 = arith.truncf %59 : vector<8x1024xf32> to vector<8x1024xbf16>
      %c0_41 = arith.constant 0 : index
      %c0_42 = arith.constant 0 : index
      %65 = vector.load %arg15[%c0_41, %c0_42] : memref<8x1024xbf16, #tpu.memory_space<vmem>>, vector<8x1024xbf16>
      tpu.vector_store %arg15[%c0_41, %c0_42], %64 {strides = array<i32>} : memref<8x1024xbf16, #tpu.memory_space<vmem>>, vector<8x1024xbf16>,
    } else {
    }
    %c0 = arith.constant 0 : index
    %c0_1 = arith.constant 0 : index
    %3 = vector.load %arg15[%c0, %c0_1] : memref<8x1024xbf16, #tpu.memory_space<vmem>>, vector<8x1024xbf16>
    %c0_2 = arith.constant 0 : index
    %c0_3 = arith.constant 0 : index
    %4 = vector.load %arg9[%c0_2, %c0_3] : memref<1024x256xbf16, #tpu.memory_space<vmem>>, vector<1024x256xbf16>
    %cst = arith.constant dense<0.000000e+00> : vector<8x256xf32>
    %5 = tpu.matmul %3, %4, %cst {dimension_numbers = #tpu.dot_dimension_numbers<[1], [0], [0], [1], [0, 0, 1, 1], [], []>} : vector<8x1024xbf16>, vector<1024x256xbf16>, vector<8x256xf32> -> vector<8x256xf32>
    %6 = math.tanh %5 : vector<8x256xf32>
    %c0_4 = arith.constant 0 : index
    %c0_5 = arith.constant 0 : index
    %7 = vector.load %arg14[%c0_4, %c0_5] : memref<8x256xf32, #tpu.memory_space<vmem>>, vector<8x256xf32>
    tpu.vector_store %arg14[%c0_4, %c0_5], %6 {strides = array<i32>} : memref<8x256xf32, #tpu.memory_space<vmem>>, vector<8x256xf32>,
    return
  }
  func.func @transform_0(%arg0: i32, %arg1: i32) -> (i32, i32) {
    %c0_i32 = arith.constant 0 : i32
    %c0_i32_0 = arith.constant 0 : i32
    return %arg0, %c0_i32 : i32, i32
  }
  func.func @transform_1(%arg0: i32, %arg1: i32) -> (i32, i32) {
    %c0_i32 = arith.constant 0 : i32
    %c0_i32_0 = arith.constant 0 : i32
    %c0_i32_1 = arith.constant 0 : i32
    return %c0_i32, %c0_i32_0 : i32, i32
  }
  func.func @transform_2(%arg0: i32, %arg1: i32) -> (i32, i32) {
    %c0_i32 = arith.constant 0 : i32
    %c0_i32_0 = arith.constant 0 : i32
    %c0_i32_1 = arith.constant 0 : i32
    return %c0_i32, %c0_i32_0 : i32, i32
  }
  func.func @transform_3(%arg0: i32, %arg1: i32) -> (i32, i32) {
    %c0_i32 = arith.constant 0 : i32
    %c0_i32_0 = arith.constant 0 : i32
    %c0_i32_1 = arith.constant 0 : i32
    return %c0_i32, %c0_i32_0 : i32, i32
  }
  func.func @transform_4(%arg0: i32, %arg1: i32) -> (i32, i32) {
    %c0_i32 = arith.constant 0 : i32
    %c0_i32_0 = arith.constant 0 : i32
    %c0_i32_1 = arith.constant 0 : i32
    return %c0_i32, %c0_i32_0 : i32, i32
  }
  func.func @transform_5(%arg0: i32, %arg1: i32) -> (i32, i32) {
    %c0_i32 = arith.constant 0 : i32
    %c0_i32_0 = arith.constant 0 : i32
    %c0_i32_1 = arith.constant 0 : i32
    return %c0_i32, %c0_i32_0 : i32, i32
  }
  func.func @transform_6(%arg0: i32, %arg1: i32) -> (i32, i32) {
    %c0_i32 = arith.constant 0 : i32
    %c0_i32_0 = arith.constant 0 : i32
    %c0_i32_1 = arith.constant 0 : i32
    return %c0_i32, %c0_i32_0 : i32, i32
  }
  func.func @transform_7(%arg0: i32, %arg1: i32) -> (i32, i32) {
    %c0_i32 = arith.constant 0 : i32
    %c0_i32_0 = arith.constant 0 : i32
    return %c0_i32, %arg1 : i32, i32
  }
  func.func @transform_8(%arg0: i32, %arg1: i32) -> (i32, i32) {
    %c0_i32 = arith.constant 0 : i32
    %c0_i32_0 = arith.constant 0 : i32
    return %arg0, %c0_i32 : i32, i32
  }
  func.func @transform_9(%arg0: i32, %arg1: i32) -> (i32, i32) {
    %c0_i32 = arith.constant 0 : i32
    %c0_i32_0 = arith.constant 0 : i32
    return %arg0, %c0_i32 : i32, i32
  }
  func.func @transform_10(%arg0: i32, %arg1: i32) -> (i32, i32) {
    %c0_i32 = arith.constant 0 : i32
    %c0_i32_0 = arith.constant 0 : i32
    return %arg0, %c0_i32 : i32, i32
  }
  func.func @transform_11(%arg0: i32, %arg1: i32) -> (i32, i32) {
    %c0_i32 = arith.constant 0 : i32
    %c0_i32_0 = arith.constant 0 : i32
    return %arg0, %c0_i32 : i32, i32
  }
  func.func @transform_12(%arg0: i32, %arg1: i32) -> (i32, i32) {
    %c0_i32 = arith.constant 0 : i32
    return %arg0, %arg1 : i32, i32
  }
}

</mosaic_0001>

<llo_original>
// kernel: tpu_custom_call.1
$region0: #{tpu_custom_call.1}
  #allocation0 [shape = 'u32[]', space=smem, size = 0x4, offset = 0x4, fixed_abs, tag = 'smem constant byte address 0x4 - core index']
  #allocation1 [shape = 'u32[144,128]{1,0:T(1,128)}', space=vmem, size = 0x12000, scoped, tag = 'internal scratch']
  #allocation2 [shape = 'bf16[8,1024]{1,0:T(8,128)(2,1)}', space=vmem, size = 0x4000, scoped, tag = 'scratch operand']
  %s0 = inlined_call_operand.hbm [shape: f32[8,1024], index: 0, kind: input, shape index: {}]
  %s1 = inlined_call_operand.hbm [shape: bf16[1024,128], index: 1, kind: input, shape index: {}]
  %s2 = inlined_call_operand.hbm [shape: f32[1,128], index: 2, kind: input, shape index: {}]
  %s3 = inlined_call_operand.hbm [shape: bf16[128,128], index: 3, kind: input, shape index: {}]
  %s4 = inlined_call_operand.hbm [shape: bf16[128,128], index: 4, kind: input, shape index: {}]
  %s5 = inlined_call_operand.hbm [shape: bf16[128,1024], index: 5, kind: input, shape index: {}]
  %s6 = inlined_call_operand.hbm [shape: f32[1,1024], index: 6, kind: input, shape index: {}]
  %s7 = inlined_call_operand.hbm [shape: bf16[1024,1024], index: 7, kind: input, shape index: {}]
  %s8 = inlined_call_operand.hbm [shape: f32[8,128], index: 8, kind: output, shape index: {0}]
  %s9 = inlined_call_operand.hbm [shape: f32[8,128], index: 9, kind: output, shape index: {1}]
  %s10 = inlined_call_operand.hbm [shape: f32[8,128], index: 10, kind: output, shape index: {2}]
  %s11 = inlined_call_operand.hbm [shape: f32[8,1024], index: 11, kind: output, shape index: {3}]
  %s12 = inlined_call_operand.hbm [shape: f32[8,1024], index: 12, kind: output, shape index: {4}]
  %13 = xla_tuple %s8, %s9, %s10, %s11, %s12
  %s14 = sld [smem:[#allocation0]]
  $region133: #{tpu_custom_call.1} parent=0
    _
  %s16 = ssub.s32 1, %s14
  %s17 = scalar_select 0, %s16, %s14
  $region1: #{tpu_custom_call.1} parent=0
    #allocation3 [shape = 'u8[32768]{0}', space=vmem, size = 0x8000, scoped, tag = 'input window, operand 0, single buffered']
    #allocation4 [shape = 's32[2]{0}', space=sflag, size = 0x8, scoped, tag = 'scoped memory for tpu_custom_call.1']
    #allocation5 [shape = 's32[2]{0}', space=sflag, size = 0x8, scoped, tag = 'scoped memory for tpu_custom_call.1']
    #allocation6 [shape = 'u8[262144]{0}', space=vmem, size = 0x40000, scoped, tag = 'input window, operand 1, single buffered']
    #allocation7 [shape = 's32[1]{0}', space=sflag, size = 0x4, scoped, tag = 'scoped memory for tpu_custom_call.1']
    #allocation8 [shape = 'u8[512]{0}', space=vmem, size = 0x400, scoped, tag = 'input window, operand 2, single buffered']
    #allocation9 [shape = 'u8[32768]{0}', space=vmem, size = 0x8000, scoped, tag = 'input window, operand 3, single buffered']
    #allocation10 [shape = 's32[1]{0}', space=sflag, size = 0x4, scoped, tag = 'scoped memory for tpu_custom_call.1']
    #allocation11 [shape = 'u8[32768]{0}', space=vmem, size = 0x8000, scoped, tag = 'input window, operand 4, single buffered']
    #allocation12 [shape = 'u8[262144]{0}', space=vmem, size = 0x40000, scoped, tag = 'input window, operand 5, single buffered']
    #allocation13 [shape = 's32[1]{0}', space=sflag, size = 0x4, scoped, tag = 'scoped memory for tpu_custom_call.1']
    #allocation14 [shape = 'u8[4096]{0}', space=vmem, size = 0x1000, scoped, tag = 'input window, operand 6, single buffered']
    #allocation15 [shape = 'u8[1048576]{0}', space=vmem, size = 0x100000, scoped, tag = 'input window, operand 7']
    #allocation16 [shape = 's32[2]{0}', space=sflag, size = 0x8, scoped, tag = 'scoped memory for tpu_custom_call.1']
    #allocation17 [shape = 'u8[4096]{0}', space=vmem, size = 0x1000, scoped, tag = 'output window, operand 0, single buffered']
    #allocation18 [shape = 'u8[4096]{0}', space=vmem, size = 0x1000, scoped, tag = 'output window, operand 1, single buffered']
    #allocation19 [shape = 's32[1]{0}', space=sflag, size = 0x4, scoped, tag = 'scoped memory for tpu_custom_call.1']
    #allocation20 [shape = 'u8[4096]{0}', space=vmem, size = 0x1000, scoped, tag = 'output window, operand 2, single buffered']
    #allocation21 [shape = 'u8[32768]{0}', space=vmem, size = 0x8000, scoped, tag = 'output window, operand 3, single buffered']
    #allocation22 [shape = 's32[1]{0}', space=sflag, size = 0x4, scoped, tag = 'scoped memory for tpu_custom_call.1']
    #allocation23 [shape = 'u8[16384]{0}', space=vmem, size = 0x4000, scoped, tag = 'output window, operand 4']
    %18 = vsyncpa [#allocation4], 0
    %19 = vsyncpa [#allocation7], 0
    %20 = vsyncpa [#allocation10], 0
    %21 = vsyncpa [#allocation13], 0
    %22 = vsyncpa [#allocation16], 0
    %s23 = scalar_lea.sflag [#allocation16], 1
    %24 = vsyncpa %s23, 0
    %25 = vsyncpa [#allocation5], 0
    %26 = vsyncpa [#allocation19], 0
    %27 = vsyncpa [#allocation22], 0
    loop: start=0, step=1, limit=6
    $region2: #{tpu_custom_call.1} parent=1 // loop_pre_header
      _
    $region3: #{tpu_custom_call.1} parent=1 // loop_header
      %s29 = sphi 0, %s33
      %p30 = scmp.ge.s32.totalorder %s29, 6
      %s36 = sphi 0, %s48
      %s37 = sphi 0, %s44
      %s38 = sphi 0, %s36
      %s39 = sphi 0, %s37
      %s40 = sphi 0, %s38
      %s41 = sphi 0, %s39
      %s51 = sphi 0, %s53
      %s54 = sphi 0, %s51
      %s55 = sphi 0, %s54
      %s71 = sphi 0, %s55
      %s75 = sphi 0, %s75
      %s77 = sphi 0, %s75
      %s78 = sphi 0, %s77
      %s92 = sphi 0, %s78
      %s96 = sphi 0, %s96
      %s98 = sphi 0, %s96
      %s99 = sphi 0, %s98
      %s113 = sphi 0, %s99
      %s117 = sphi 0, %s117
      %s119 = sphi 0, %s117
      %s120 = sphi 0, %s119
      %s134 = sphi 0, %s120
      %s138 = sphi 0, %s138
      %s140 = sphi 0, %s138
      %s141 = sphi 0, %s140
      %s155 = sphi 0, %s141
      %s159 = sphi 0, %s159
      %s161 = sphi 0, %s159
      %s162 = sphi 0, %s161
      %s176 = sphi 0, %s162
      %s180 = sphi 0, %s180
      %s182 = sphi 0, %s180
      %s183 = sphi 0, %s182
      %s197 = sphi 0, %s183
      %s203 = sphi 0, %s205
      %s206 = sphi 0, %s203
      %s207 = sphi 0, %s206
      %s223 = sphi 0, %s207
      %s229 = sphi 0, %s231
      %s232 = sphi 0, %s229
      %s233 = sphi 0, %s232
      %s249 = sphi 0, %s233
      %s255 = sphi 0, %s257
      %s258 = sphi 0, %s255
      %s259 = sphi 0, %s258
      %s275 = sphi 0, %s259
      %s281 = sphi 0, %s283
      %s284 = sphi 0, %s281
      %s285 = sphi 0, %s284
      %s301 = sphi 0, %s285
      %s307 = sphi 0, %s309
      %s310 = sphi 0, %s307
      %s311 = sphi 0, %s310
      %s327 = sphi 0, %s311
      %s335 = sphi 0, %s337
      %s338 = sphi 0, %s335
      %s339 = sphi 0, %s338
      %s355 = sphi 0, %s339
    $region4: #{tpu_custom_call.1} parent=1 // loop_header_branch
      %32 = sbr.rel (%p30) target = $region8
    $region5: #{tpu_custom_call.1} parent=1 // loop_body
      %s34 = ssub.s32 %s29, 1
      %s35 = ssub.s32 %s29, 2
      %s42 = sadd.s32 1, %s37
      %p43 = scmp.ge.s32.totalorder %s42, 4
      %s44 = scalar_select %p43, 0, %s42
      %s45 = sadd.s32 1, %s36
      %s46 = scalar_select %p43, %s45, %s36
      %p47 = scmp.ge.s32.totalorder %s46, 1
      %s48 = scalar_select %p47, 0, %s46
      %s49 = ssub.s32 %s36, %s48
      %p50 = scmp.eq.s32.totalorder %s49, 0
      %s52 = sadd.s32 %s51, 1
      %s53 = scalar_select %p50, %s51, %s52
      %p56 = pneg %p50
      %p57 = scmp.eq.s32.totalorder %s29, 3
      %p58 = por %p56, %p57
      %p59 = scmp.ne.s32.totalorder %s51, %s54
      %p60 = scmp.eq.s32.totalorder %s29, 0
      %p61 = por %p59, %p60
      %p62 = scmp.ne.s32.totalorder %s51, %s54
      %p63 = scmp.eq.s32.totalorder %s34, 3
      %p64 = por %p62, %p63
      %p65 = scmp.ne.s32.totalorder %s54, %s55
      %p66 = scmp.eq.s32.totalorder %s34, 0
      %p67 = por %p65, %p66
      %p68 = scmp.ne.s32.totalorder %s54, %s55
      %p69 = scmp.eq.s32.totalorder %s35, 3
      %p70 = por %p68, %p69
      %p72 = scmp.ne.s32.totalorder %s55, %s71
      %p73 = scmp.eq.s32.totalorder %s35, 0
      %p74 = por %p72, %p73
      %s76 = sadd.s32 %s75, 1
      %p79 = scmp.eq.s32.totalorder %s29, 3
      %p80 = scmp.ne.s32.totalorder %s75, %s77
      %p81 = scmp.eq.s32.totalorder %s29, 0
      %p82 = por %p80, %p81
      %p83 = scmp.ne.s32.totalorder %s75, %s77
      %p84 = scmp.eq.s32.totalorder %s34, 3
      %p85 = por %p83, %p84
      %p86 = scmp.ne.s32.totalorder %s77, %s78
      %p87 = scmp.eq.s32.totalorder %s34, 0
      %p88 = por %p86, %p87
      %p89 = scmp.ne.s32.totalorder %s77, %s78
      %p90 = scmp.eq.s32.totalorder %s35, 3
      %p91 = por %p89, %p90
      %p93 = scmp.ne.s32.totalorder %s78, %s92
      %p94 = scmp.eq.s32.totalorder %s35, 0
      %p95 = por %p93, %p94
      %s97 = sadd.s32 %s96, 1
      %p100 = scmp.eq.s32.totalorder %s29, 3
      %p101 = scmp.ne.s32.totalorder %s96, %s98
      %p102 = scmp.eq.s32.totalorder %s29, 0
      %p103 = por %p101, %p102
      %p104 = scmp.ne.s32.totalorder %s96, %s98
      %p105 = scmp.eq.s32.totalorder %s34, 3
      %p106 = por %p104, %p105
      %p107 = scmp.ne.s32.totalorder %s98, %s99
      %p108 = scmp.eq.s32.totalorder %s34, 0
      %p109 = por %p107, %p108
      %p110 = scmp.ne.s32.totalorder %s98, %s99
      %p111 = scmp.eq.s32.totalorder %s35, 3
      %p112 = por %p110, %p111
      %p114 = scmp.ne.s32.totalorder %s99, %s113
      %p115 = scmp.eq.s32.totalorder %s35, 0
      %p116 = por %p114, %p115
      %s118 = sadd.s32 %s117, 1
      %p121 = scmp.eq.s32.totalorder %s29, 3
      %p122 = scmp.ne.s32.totalorder %s117, %s119
      %p123 = scmp.eq.s32.totalorder %s29, 0
      %p124 = por %p122, %p123
      %p125 = scmp.ne.s32.totalorder %s117, %s119
      %p126 = scmp.eq.s32.totalorder %s34, 3
      %p127 = por %p125, %p126
      %p128 = scmp.ne.s32.totalorder %s119, %s120
      %p129 = scmp.eq.s32.totalorder %s34, 0
      %p130 = por %p128, %p129
      %p131 = scmp.ne.s32.totalorder %s119, %s120
      %p132 = scmp.eq.s32.totalorder %s35, 3
      %p133 = por %p131, %p132
      %p135 = scmp.ne.s32.totalorder %s120, %s134
      %p136 = scmp.eq.s32.totalorder %s35, 0
      %p137 = por %p135, %p136
      %s139 = sadd.s32 %s138, 1
      %p142 = scmp.eq.s32.totalorder %s29, 3
      %p143 = scmp.ne.s32.totalorder %s138, %s140
      %p144 = scmp.eq.s32.totalorder %s29, 0
      %p145 = por %p143, %p144
      %p146 = scmp.ne.s32.totalorder %s138, %s140
      %p147 = scmp.eq.s32.totalorder %s34, 3
      %p148 = por %p146, %p147
      %p149 = scmp.ne.s32.totalorder %s140, %s141
      %p150 = scmp.eq.s32.totalorder %s34, 0
      %p151 = por %p149, %p150
      %p152 = scmp.ne.s32.totalorder %s140, %s141
      %p153 = scmp.eq.s32.totalorder %s35, 3
      %p154 = por %p152, %p153
      %p156 = scmp.ne.s32.totalorder %s141, %s155
      %p157 = scmp.eq.s32.totalorder %s35, 0
      %p158 = por %p156, %p157
      %s160 = sadd.s32 %s159, 1
      %p163 = scmp.eq.s32.totalorder %s29, 3
      %p164 = scmp.ne.s32.totalorder %s159, %s161
      %p165 = scmp.eq.s32.totalorder %s29, 0
      %p166 = por %p164, %p165
      %p167 = scmp.ne.s32.totalorder %s159, %s161
      %p168 = scmp.eq.s32.totalorder %s34, 3
      %p169 = por %p167, %p168
      %p170 = scmp.ne.s32.totalorder %s161, %s162
      %p171 = scmp.eq.s32.totalorder %s34, 0
      %p172 = por %p170, %p171
      %p173 = scmp.ne.s32.totalorder %s161, %s162
      %p174 = scmp.eq.s32.totalorder %s35, 3
      %p175 = por %p173, %p174
      %p177 = scmp.ne.s32.totalorder %s162, %s176
      %p178 = scmp.eq.s32.totalorder %s35, 0
      %p179 = por %p177, %p178
      %s181 = sadd.s32 %s180, 1
      %p184 = scmp.eq.s32.totalorder %s29, 3
      %p185 = scmp.ne.s32.totalorder %s180, %s182
      %p186 = scmp.eq.s32.totalorder %s29, 0
      %p187 = por %p185, %p186
      %p188 = scmp.ne.s32.totalorder %s180, %s182
      %p189 = scmp.eq.s32.totalorder %s34, 3
      %p190 = por %p188, %p189
      %p191 = scmp.ne.s32.totalorder %s182, %s183
      %p192 = scmp.eq.s32.totalorder %s34, 0
      %p193 = por %p191, %p192
      %p194 = scmp.ne.s32.totalorder %s182, %s183
      %p195 = scmp.eq.s32.totalorder %s35, 3
      %p196 = por %p194, %p195
      %p198 = scmp.ne.s32.totalorder %s183, %s197
      %p199 = scmp.eq.s32.totalorder %s35, 0
      %p200 = por %p198, %p199
      %s201 = ssub.s32 %s37, %s44
      %p202 = scmp.eq.s32.totalorder %s201, 0
      %s204 = sadd.s32 %s203, 1
      %s205 = scalar_select %p202, %s203, %s204
      %p208 = pneg %p202
      %p209 = scmp.eq.s32.totalorder %s29, 3
      %p210 = por %p208, %p209
      %p211 = scmp.ne.s32.totalorder %s203, %s206
      %p212 = scmp.eq.s32.totalorder %s29, 0
      %p213 = por %p211, %p212
      %p214 = scmp.ne.s32.totalorder %s203, %s206
      %p215 = scmp.eq.s32.totalorder %s34, 3
      %p216 = por %p214, %p215
      %p217 = scmp.ne.s32.totalorder %s206, %s207
      %p218 = scmp.eq.s32.totalorder %s34, 0
      %p219 = por %p217, %p218
      %p220 = scmp.ne.s32.totalorder %s206, %s207
      %p221 = scmp.eq.s32.totalorder %s35, 3
      %p222 = por %p220, %p221
      %p224 = scmp.ne.s32.totalorder %s207, %s223
      %p225 = scmp.eq.s32.totalorder %s35, 0
      %p226 = por %p224, %p225
      %s227 = ssub.s32 %s36, %s48
      %p228 = scmp.eq.s32.totalorder %s227, 0
      %s230 = sadd.s32 %s229, 1
      %s231 = scalar_select %p228, %s229, %s230
      %p234 = pneg %p228
      %p235 = scmp.eq.s32.totalorder %s29, 3
      %p236 = por %p234, %p235
      %p237 = scmp.ne.s32.totalorder %s229, %s232
      %p238 = scmp.eq.s32.totalorder %s29, 0
      %p239 = por %p237, %p238
      %p240 = scmp.ne.s32.totalorder %s229, %s232
      %p241 = scmp.eq.s32.totalorder %s34, 3
      %p242 = por %p240, %p241
      %p243 = scmp.ne.s32.totalorder %s232, %s233
      %p244 = scmp.eq.s32.totalorder %s34, 0
      %p245 = por %p243, %p244
      %p246 = scmp.ne.s32.totalorder %s232, %s233
      %p247 = scmp.eq.s32.totalorder %s35, 3
      %p248 = por %p246, %p247
      %p250 = scmp.ne.s32.totalorder %s233, %s249
      %p251 = scmp.eq.s32.totalorder %s35, 0
      %p252 = por %p250, %p251
      %s253 = ssub.s32 %s36, %s48
      %p254 = scmp.eq.s32.totalorder %s253, 0
      %s256 = sadd.s32 %s255, 1
      %s257 = scalar_select %p254, %s255, %s256
      %p260 = pneg %p254
      %p261 = scmp.eq.s32.totalorder %s29, 3
      %p262 = por %p260, %p261
      %p263 = scmp.ne.s32.totalorder %s255, %s258
      %p264 = scmp.eq.s32.totalorder %s29, 0
      %p265 = por %p263, %p264
      %p266 = scmp.ne.s32.totalorder %s255, %s258
      %p267 = scmp.eq.s32.totalorder %s34, 3
      %p268 = por %p266, %p267
      %p269 = scmp.ne.s32.totalorder %s258, %s259
      %p270 = scmp.eq.s32.totalorder %s34, 0
      %p271 = por %p269, %p270
      %p272 = scmp.ne.s32.totalorder %s258, %s259
      %p273 = scmp.eq.s32.totalorder %s35, 3
      %p274 = por %p272, %p273
      %p276 = scmp.ne.s32.totalorder %s259, %s275
      %p277 = scmp.eq.s32.totalorder %s35, 0
      %p278 = por %p276, %p277
      %s279 = ssub.s32 %s36, %s48
      %p280 = scmp.eq.s32.totalorder %s279, 0
      %s282 = sadd.s32 %s281, 1
      %s283 = scalar_select %p280, %s281, %s282
      %p286 = pneg %p280
      %p287 = scmp.eq.s32.totalorder %s29, 3
      %p288 = por %p286, %p287
      %p289 = scmp.ne.s32.totalorder %s281, %s284
      %p290 = scmp.eq.s32.totalorder %s29, 0
      %p291 = por %p289, %p290
      %p292 = scmp.ne.s32.totalorder %s281, %s284
      %p293 = scmp.eq.s32.totalorder %s34, 3
      %p294 = por %p292, %p293
      %p295 = scmp.ne.s32.totalorder %s284, %s285
      %p296 = scmp.eq.s32.totalorder %s34, 0
      %p297 = por %p295, %p296
      %p298 = scmp.ne.s32.totalorder %s284, %s285
      %p299 = scmp.eq.s32.totalorder %s35, 3
      %p300 = por %p298, %p299
      %p302 = scmp.ne.s32.totalorder %s285, %s301
      %p303 = scmp.eq.s32.totalorder %s35, 0
      %p304 = por %p302, %p303
      %s305 = ssub.s32 %s36, %s48
      %p306 = scmp.eq.s32.totalorder %s305, 0
      %s308 = sadd.s32 %s307, 1
      %s309 = scalar_select %p306, %s307, %s308
      %p312 = pneg %p306
      %p313 = scmp.eq.s32.totalorder %s29, 3
      %p314 = por %p312, %p313
      %p315 = scmp.ne.s32.totalorder %s307, %s310
      %p316 = scmp.eq.s32.totalorder %s29, 0
      %p317 = por %p315, %p316
      %p318 = scmp.ne.s32.totalorder %s307, %s310
      %p319 = scmp.eq.s32.totalorder %s34, 3
      %p320 = por %p318, %p319
      %p321 = scmp.ne.s32.totalorder %s310, %s311
      %p322 = scmp.eq.s32.totalorder %s34, 0
      %p323 = por %p321, %p322
      %p324 = scmp.ne.s32.totalorder %s310, %s311
      %p325 = scmp.eq.s32.totalorder %s35, 3
      %p326 = por %p324, %p325
      %p328 = scmp.ne.s32.totalorder %s311, %s327
      %p329 = scmp.eq.s32.totalorder %s35, 0
      %p330 = por %p328, %p329
      %s331 = ssub.s32 %s36, %s48
      %s332 = ssub.s32 %s37, %s44
      %s333 = sor.u32 %s331, %s332
      %p334 = scmp.eq.s32.totalorder %s333, 0
      %s336 = sadd.s32 %s335, 1
      %s337 = scalar_select %p334, %s335, %s336
      %p340 = pneg %p334
      %p341 = scmp.eq.s32.totalorder %s29, 3
      %p342 = por %p340, %p341
      %p343 = scmp.ne.s32.totalorder %s335, %s338
      %p344 = scmp.eq.s32.totalorder %s29, 0
      %p345 = por %p343, %p344
      %p346 = scmp.ne.s32.totalorder %s335, %s338
      %p347 = scmp.eq.s32.totalorder %s34, 3
      %p348 = por %p346, %p347
      %p349 = scmp.ne.s32.totalorder %s338, %s339
      %p350 = scmp.eq.s32.totalorder %s34, 0
      %p351 = por %p349, %p350
      %p352 = scmp.ne.s32.totalorder %s338, %s339
      %p353 = scmp.eq.s32.totalorder %s35, 3
      %p354 = por %p352, %p353
      %p356 = scmp.ne.s32.totalorder %s339, %s355
      %p357 = scmp.eq.s32.totalorder %s35, 0
      %p358 = por %p356, %p357
      %p359 = scmp.le.s32.totalorder 1, %s29
      %p360 = scmp.lt.s32.totalorder %s29, 5
      %p361 = pnand %p359, %p360
      %p362 = pneg %p361
      // Predicated region
      $region9: #{tpu_custom_call.1} parent=5 // pred_check
        _
      $region10: #{tpu_custom_call.1} parent=5 // pred_check_branch
        %364 = sbr.rel (%p361) target = $region12
      $region11: #{tpu_custom_call.1} parent=5 // pred_region
        %s365 = ssub.s32 %s29, 1
        // Predicated region
        $region13: #{tpu_custom_call.1} parent=11 // pred_check
          %p366 = pneg %p67
        $region14: #{tpu_custom_call.1} parent=11 // pred_check_branch
          %368 = sbr.rel (%p366) target = $region16
        $region15: #{tpu_custom_call.1} parent=11 // pred_region
          %s370 = ssub.s32 1024, 1024
          %371 = vsyncadd [#allocation4], %s370
          %s372 = smul.addr %s38, 8
          %s373 = smul.addr %s372, 128
          %s374 = scalar_lea.hbm %s0, %s373
          %s376 = sshll.u32 [#allocation3], 4
          %s377 = int_to_ptr.vmem [resolvable:$true] %s376
          %379 = dma.hbm_to_vmem [thread:$0]  %s374, 1024, %s377, [#allocation4]
        $region16: #{tpu_custom_call.1} parent=11 // pred_fallthru
          _
        // Predicated region
        $region17: #{tpu_custom_call.1} parent=11 // pred_check
          %p380 = pneg %p88
        $region18: #{tpu_custom_call.1} parent=11 // pred_check_branch
          %382 = sbr.rel (%p380) target = $region20
        $region19: #{tpu_custom_call.1} parent=11 // pred_region
          %s384 = ssub.s32 8192, 8192
          %385 = vsyncadd [#allocation7], %s384
          %s386 = sshll.u32 [#allocation6], 4
          %s387 = int_to_ptr.vmem [resolvable:$true] %s386
          %392 = dma.hbm_to_vmem [thread:$0]  %s1, 8192, %s387, [#allocation7], 64, 64, 4
        $region20: #{tpu_custom_call.1} parent=11 // pred_fallthru
          _
        // Predicated region
        $region21: #{tpu_custom_call.1} parent=11 // pred_check
          %p393 = pneg %p109
        $region22: #{tpu_custom_call.1} parent=11 // pred_check_branch
          %395 = sbr.rel (%p393) target = $region24
        $region23: #{tpu_custom_call.1} parent=11 // pred_region
          %s397 = ssub.s32 16, 16
          %398 = vsyncadd [#allocation7], %s397
          %s400 = sshll.u32 [#allocation8], 4
          %s401 = int_to_ptr.vmem [resolvable:$true] %s400
          %403 = dma.hbm_to_vmem [thread:$0]  %s2, 16, %s401, [#allocation7]
        $region24: #{tpu_custom_call.1} parent=11 // pred_fallthru
          _
        // Predicated region
        $region25: #{tpu_custom_call.1} parent=11 // pred_check
          %p404 = pneg %p130
        $region26: #{tpu_custom_call.1} parent=11 // pred_check_branch
          %406 = sbr.rel (%p404) target = $region28
        $region27: #{tpu_custom_call.1} parent=11 // pred_region
          %s408 = ssub.s32 1024, 1024
          %409 = vsyncadd [#allocation10], %s408
          %s410 = sshll.u32 [#allocation9], 4
          %s411 = int_to_ptr.vmem [resolvable:$true] %s410
          %416 = dma.hbm_to_vmem [thread:$0]  %s3, 1024, %s411, [#allocation10], 64, 64, 4
        $region28: #{tpu_custom_call.1} parent=11 // pred_fallthru
          _
        // Predicated region
        $region29: #{tpu_custom_call.1} parent=11 // pred_check
          %p417 = pneg %p151
        $region30: #{tpu_custom_call.1} parent=11 // pred_check_branch
          %419 = sbr.rel (%p417) target = $region32
        $region31: #{tpu_custom_call.1} parent=11 // pred_region
          %s421 = ssub.s32 1024, 1024
          %422 = vsyncadd [#allocation10], %s421
          %s423 = sshll.u32 [#allocation11], 4
          %s424 = int_to_ptr.vmem [resolvable:$true] %s423
          %429 = dma.hbm_to_vmem [thread:$0]  %s4, 1024, %s424, [#allocation10], 64, 64, 4
        $region32: #{tpu_custom_call.1} parent=11 // pred_fallthru
          _
        // Predicated region
        $region33: #{tpu_custom_call.1} parent=11 // pred_check
          %p430 = pneg %p172
        $region34: #{tpu_custom_call.1} parent=11 // pred_check_branch
          %432 = sbr.rel (%p430) target = $region36
        $region35: #{tpu_custom_call.1} parent=11 // pred_region
          %s434 = ssub.s32 8192, 8192
          %435 = vsyncadd [#allocation13], %s434
          %s436 = sshll.u32 [#allocation12], 4
          %s437 = int_to_ptr.vmem [resolvable:$true] %s436
          %442 = dma.hbm_to_vmem [thread:$0]  %s5, 8192, %s437, [#allocation13], 512, 512, 32
        $region36: #{tpu_custom_call.1} parent=11 // pred_fallthru
          _
        // Predicated region
        $region37: #{tpu_custom_call.1} parent=11 // pred_check
          %p443 = pneg %p193
        $region38: #{tpu_custom_call.1} parent=11 // pred_check_branch
          %445 = sbr.rel (%p443) target = $region40
        $region39: #{tpu_custom_call.1} parent=11 // pred_region
          %s447 = ssub.s32 128, 128
          %448 = vsyncadd [#allocation13], %s447
          %s450 = sshll.u32 [#allocation14], 4
          %s451 = int_to_ptr.vmem [resolvable:$true] %s450
          %453 = dma.hbm_to_vmem [thread:$0]  %s6, 128, %s451, [#allocation13]
        $region40: #{tpu_custom_call.1} parent=11 // pred_fallthru
          _
      $region12: #{tpu_custom_call.1} parent=5 // pred_fallthru
        _
      %p454 = scmp.lt.s32.totalorder %s29, 4
      // Predicated region
      $region41: #{tpu_custom_call.1} parent=5 // pred_check
        %p455 = pneg %p454
      $region42: #{tpu_custom_call.1} parent=5 // pred_check_branch
        %457 = sbr.rel (%p455) target = $region44
      $region43: #{tpu_custom_call.1} parent=5 // pred_region
        // Predicated region
        $region45: #{tpu_custom_call.1} parent=43 // pred_check
          %p458 = pneg %p213
        $region46: #{tpu_custom_call.1} parent=43 // pred_check_branch
          %460 = sbr.rel (%p458) target = $region48
        $region47: #{tpu_custom_call.1} parent=43 // pred_region
          %s461 = sand.u32 %s203, 1
          %s462 = scalar_lea.sflag [#allocation16], %s461
          %s463 = sand.u32 %s203, 1
          %s464 = smul.addr %s463, 1024
          %s465 = scalar_lea.vmem [#allocation15], %s464
          %s466 = smul.u32 2, %s37
          %s468 = ssub.s32 16384, 16384
          %469 = vsyncadd %s462, %s468
          %s470 = smul.addr %s466, 64
          %s471 = scalar_lea.hbm %s7, %s470
          %s472 = sshll.u32 %s465, 4
          %s473 = int_to_ptr.vmem [resolvable:$true] %s472
          %478 = dma.hbm_to_vmem [thread:$0]  %s471, 16384, %s473, %s462, 512, 128, 8
        $region48: #{tpu_custom_call.1} parent=43 // pred_fallthru
          _
      $region44: #{tpu_custom_call.1} parent=5 // pred_fallthru
        _
      %p479 = scmp.le.s32.totalorder 1, %s29
      %p480 = scmp.lt.s32.totalorder %s29, 5
      %p481 = pnand %p479, %p480
      %p482 = pneg %p481
      // Predicated region
      $region49: #{tpu_custom_call.1} parent=5 // pred_check
        _
      $region50: #{tpu_custom_call.1} parent=5 // pred_check_branch
        %484 = sbr.rel (%p481) target = $region52
      $region51: #{tpu_custom_call.1} parent=5 // pred_region
        %s485 = ssub.s32 %s29, 1
        // Predicated region
        $region53: #{tpu_custom_call.1} parent=51 // pred_check
          %p486 = pneg %p67
        $region54: #{tpu_custom_call.1} parent=51 // pred_check_branch
          %488 = sbr.rel (%p486) target = $region56
        $region55: #{tpu_custom_call.1} parent=51 // pred_region
          %489 = dma.done [#allocation4], 1024
        $region56: #{tpu_custom_call.1} parent=51 // pred_fallthru
          _
        // Predicated region
        $region57: #{tpu_custom_call.1} parent=51 // pred_check
          %p490 = pneg %p88
        $region58: #{tpu_custom_call.1} parent=51 // pred_check_branch
          %492 = sbr.rel (%p490) target = $region60
        $region59: #{tpu_custom_call.1} parent=51 // pred_region
          %493 = dma.done [#allocation7], 8192
        $region60: #{tpu_custom_call.1} parent=51 // pred_fallthru
          _
        // Predicated region
        $region61: #{tpu_custom_call.1} parent=51 // pred_check
          %p494 = pneg %p109
        $region62: #{tpu_custom_call.1} parent=51 // pred_check_branch
          %496 = sbr.rel (%p494) target = $region64
        $region63: #{tpu_custom_call.1} parent=51 // pred_region
          %497 = dma.done [#allocation7], 16
        $region64: #{tpu_custom_call.1} parent=51 // pred_fallthru
          _
        // Predicated region
        $region65: #{tpu_custom_call.1} parent=51 // pred_check
          %p498 = pneg %p130
        $region66: #{tpu_custom_call.1} parent=51 // pred_check_branch
          %500 = sbr.rel (%p498) target = $region68
        $region67: #{tpu_custom_call.1} parent=51 // pred_region
          %501 = dma.done [#allocation10], 1024
        $region68: #{tpu_custom_call.1} parent=51 // pred_fallthru
          _
        // Predicated region
        $region69: #{tpu_custom_call.1} parent=51 // pred_check
          %p502 = pneg %p151
        $region70: #{tpu_custom_call.1} parent=51 // pred_check_branch
          %504 = sbr.rel (%p502) target = $region72
        $region71: #{tpu_custom_call.1} parent=51 // pred_region
          %505 = dma.done [#allocation10], 1024
        $region72: #{tpu_custom_call.1} parent=51 // pred_fallthru
          _
        // Predicated region
        $region73: #{tpu_custom_call.1} parent=51 // pred_check
          %p506 = pneg %p172
        $region74: #{tpu_custom_call.1} parent=51 // pred_check_branch
          %508 = sbr.rel (%p506) target = $region76
        $region75: #{tpu_custom_call.1} parent=51 // pred_region
          %509 = dma.done [#allocation13], 8192
        $region76: #{tpu_custom_call.1} parent=51 // pred_fallthru
          _
        // Predicated region
        $region77: #{tpu_custom_call.1} parent=51 // pred_check
          %p510 = pneg %p193
        $region78: #{tpu_custom_call.1} parent=51 // pred_check_branch
          %512 = sbr.rel (%p510) target = $region80
        $region79: #{tpu_custom_call.1} parent=51 // pred_region
          %513 = dma.done [#allocation13], 128
        $region80: #{tpu_custom_call.1} parent=51 // pred_fallthru
          _
        %s514 = sand.u32 %s206, 1
        %s515 = scalar_lea.sflag [#allocation16], %s514
        %s516 = sand.u32 %s206, 1
        %s517 = smul.addr %s516, 1024
        %s518 = scalar_lea.vmem [#allocation15], %s517
        // Predicated region
        $region81: #{tpu_custom_call.1} parent=51 // pred_check
          %p519 = pneg %p219
        $region82: #{tpu_custom_call.1} parent=51 // pred_check_branch
          %521 = sbr.rel (%p519) target = $region84
        $region83: #{tpu_custom_call.1} parent=51 // pred_region
          %522 = dma.done %s515, 16384
        $region84: #{tpu_custom_call.1} parent=51 // pred_fallthru
          _
        %p523 = pneg %p67
        %p524 = pneg %p64
        %p525 = pneg %p88
        %p526 = pneg %p85
        %p527 = pneg %p109
        %p528 = pneg %p106
        %p529 = pneg %p130
        %p530 = pneg %p127
        %p531 = pneg %p151
        %p532 = pneg %p148
        %p533 = pneg %p172
        %p534 = pneg %p169
        %p535 = pneg %p193
        %p536 = pneg %p190
        %s537 = sand.u32 %s206, 1
        %s538 = scalar_lea.sflag [#allocation16], %s537
        %s539 = sand.u32 %s206, 1
        %s540 = smul.addr %s539, 1024
        %s541 = scalar_lea.vmem [#allocation15], %s540
        %p542 = pneg %p219
        %p543 = pneg %p216
        %p544 = pneg %p245
        %p545 = pneg %p242
        %p546 = pneg %p271
        %p547 = pneg %p268
        %p548 = pneg %p297
        %p549 = pneg %p294
        %p550 = pneg %p323
        %p551 = pneg %p320
        %p552 = pneg %p351
        %p553 = pneg %p348
        %s554 = sand.u32 %s34, 1
        %s555 = scalar_lea.sflag [#allocation5], %s554
        %s556 = sand.u32 %s338, 1
        %s557 = smul.addr %s556, 16
        %s558 = scalar_lea.vmem [#allocation23], %s557
        %s559 = smul.u32 2, %s39
        %s560 = smul.u32 2, %s39
        %p562 = scmp.eq.s32.totalorder %s39, 0
        // Predicated region
        $region85: #{tpu_custom_call.1} parent=51 // pred_check
          %p563 = pneg %p562
        $region86: #{tpu_custom_call.1} parent=51 // pred_check_branch
          %565 = sbr.rel (%p563) target = $region88
        $region87: #{tpu_custom_call.1} parent=51 // pred_region
          %v566 = vld [vmem:[#allocation3] sm:$0xff]
          %v567 = vld [vmem:[#allocation3 + $0x8] sm:$0xff]
          %v568 = vld [vmem:[#allocation3 + $0x10] sm:$0xff]
          %v569 = vld [vmem:[#allocation3 + $0x18] sm:$0xff]
          %v570 = vld [vmem:[#allocation3 + $0x20] sm:$0xff]
          %v571 = vld [vmem:[#allocation3 + $0x28] sm:$0xff]
          %v572 = vld [vmem:[#allocation3 + $0x30] sm:$0xff]
          %v573 = vld [vmem:[#allocation3 + $0x38] sm:$0xff]
          %v574 = vpack.c.bf16 %v566, %v566
          %v575 = vpack.c.bf16 %v567, %v567
          %v576 = vpack.c.bf16 %v568, %v568
          %v577 = vpack.c.bf16 %v569, %v569
          %v578 = vpack.c.bf16 %v570, %v570
          %v579 = vpack.c.bf16 %v571, %v571
          %v580 = vpack.c.bf16 %v572, %v572
          %v581 = vpack.c.bf16 %v573, %v573
          %v582 = vld [vmem:[#allocation6] sm:$0xf]
          %v583 = vld [vmem:[#allocation6 + $0x4] sm:$0xf]
          %v584 = vld [vmem:[#allocation6 + $0x8] sm:$0xf]
          %v585 = vld [vmem:[#allocation6 + $0xc] sm:$0xf]
          %v586 = vld [vmem:[#allocation6 + $0x10] sm:$0xf]
          %v587 = vld [vmem:[#allocation6 + $0x14] sm:$0xf]
          %v588 = vld [vmem:[#allocation6 + $0x18] sm:$0xf]
          %v589 = vld [vmem:[#allocation6 + $0x1c] sm:$0xf]
          %v590 = vld [vmem:[#allocation6 + $0x20] sm:$0xf]
          %v591 = vld [vmem:[#allocation6 + $0x24] sm:$0xf]
          %v592 = vld [vmem:[#allocation6 + $0x28] sm:$0xf]
          %v593 = vld [vmem:[#allocation6 + $0x2c] sm:$0xf]
          %v594 = vld [vmem:[#allocation6 + $0x30] sm:$0xf]
          %v595 = vld [vmem:[#allocation6 + $0x34] sm:$0xf]
          %v596 = vld [vmem:[#allocation6 + $0x38] sm:$0xf]
          %v597 = vld [vmem:[#allocation6 + $0x3c] sm:$0xf]
          %v598 = vld [vmem:[#allocation6 + $0x40] sm:$0xf]
          %v599 = vld [vmem:[#allocation6 + $0x44] sm:$0xf]
          %v600 = vld [vmem:[#allocation6 + $0x48] sm:$0xf]
          %v601 = vld [vmem:[#allocation6 + $0x4c] sm:$0xf]
          %v602 = vld [vmem:[#allocation6 + $0x50] sm:$0xf]
          %v603 = vld [vmem:[#allocation6 + $0x54] sm:$0xf]
          %v604 = vld [vmem:[#allocation6 + $0x58] sm:$0xf]
          %v605 = vld [vmem:[#allocation6 + $0x5c] sm:$0xf]
          %v606 = vld [vmem:[#allocation6 + $0x60] sm:$0xf]
          %v607 = vld [vmem:[#allocation6 + $0x64] sm:$0xf]
          %v608 = vld [vmem:[#allocation6 + $0x68] sm:$0xf]
          %v609 = vld [vmem:[#allocation6 + $0x6c] sm:$0xf]
          %v610 = vld [vmem:[#allocation6 + $0x70] sm:$0xf]
          %v611 = vld [vmem:[#allocation6 + $0x74] sm:$0xf]
          %v612 = vld [vmem:[#allocation6 + $0x78] sm:$0xf]
          %v613 = vld [vmem:[#allocation6 + $0x7c] sm:$0xf]
          %v614 = vld [vmem:[#allocation6 + $0x80] sm:$0xf]
          %v615 = vld [vmem:[#allocation6 + $0x84] sm:$0xf]
          %v616 = vld [vmem:[#allocation6 + $0x88] sm:$0xf]
          %v617 = vld [vmem:[#allocation6 + $0x8c] sm:$0xf]
          %v618 = vld [vmem:[#allocation6 + $0x90] sm:$0xf]
          %v619 = vld [vmem:[#allocation6 + $0x94] sm:$0xf]
          %v620 = vld [vmem:[#allocation6 + $0x98] sm:$0xf]
          %v621 = vld [vmem:[#allocation6 + $0x9c] sm:$0xf]
          %v622 = vld [vmem:[#allocation6 + $0xa0] sm:$0xf]
          %v623 = vld [vmem:[#allocation6 + $0xa4] sm:$0xf]
          %v624 = vld [vmem:[#allocation6 + $0xa8] sm:$0xf]
          %v625 = vld [vmem:[#allocation6 + $0xac] sm:$0xf]
          %v626 = vld [vmem:[#allocation6 + $0xb0] sm:$0xf]
          %v627 = vld [vmem:[#allocation6 + $0xb4] sm:$0xf]
          %v628 = vld [vmem:[#allocation6 + $0xb8] sm:$0xf]
          %v629 = vld [vmem:[#allocation6 + $0xbc] sm:$0xf]
          %v630 = vld [vmem:[#allocation6 + $0xc0] sm:$0xf]
          %v631 = vld [vmem:[#allocation6 + $0xc4] sm:$0xf]
          %v632 = vld [vmem:[#allocation6 + $0xc8] sm:$0xf]
          %v633 = vld [vmem:[#allocation6 + $0xcc] sm:$0xf]
          %v634 = vld [vmem:[#allocation6 + $0xd0] sm:$0xf]
          %v635 = vld [vmem:[#allocation6 + $0xd4] sm:$0xf]
          %v636 = vld [vmem:[#allocation6 + $0xd8] sm:$0xf]
          %v637 = vld [vmem:[#allocation6 + $0xdc] sm:$0xf]
          %v638 = vld [vmem:[#allocation6 + $0xe0] sm:$0xf]
          %v639 = vld [vmem:[#allocation6 + $0xe4] sm:$0xf]
          %v640 = vld [vmem:[#allocation6 + $0xe8] sm:$0xf]
          %v641 = vld [vmem:[#allocation6 + $0xec] sm:$0xf]
          %v642 = vld [vmem:[#allocation6 + $0xf0] sm:$0xf]
          %v643 = vld [vmem:[#allocation6 + $0xf4] sm:$0xf]
          %v644 = vld [vmem:[#allocation6 + $0xf8] sm:$0xf]
          %v645 = vld [vmem:[#allocation6 + $0xfc] sm:$0xf]
          %v646 = vld [vmem:[#allocation6 + $0x100] sm:$0xf]
          %v647 = vld [vmem:[#allocation6 + $0x104] sm:$0xf]
          %v648 = vld [vmem:[#allocation6 + $0x108] sm:$0xf]
          %v649 = vld [vmem:[#allocation6 + $0x10c] sm:$0xf]
          %v650 = vld [vmem:[#allocation6 + $0x110] sm:$0xf]
          %v651 = vld [vmem:[#allocation6 + $0x114] sm:$0xf]
          %v652 = vld [vmem:[#allocation6 + $0x118] sm:$0xf]
          %v653 = vld [vmem:[#allocation6 + $0x11c] sm:$0xf]
          %v654 = vld [vmem:[#allocation6 + $0x120] sm:$0xf]
          %v655 = vld [vmem:[#allocation6 + $0x124] sm:$0xf]
          %v656 = vld [vmem:[#allocation6 + $0x128] sm:$0xf]
          %v657 = vld [vmem:[#allocation6 + $0x12c] sm:$0xf]
          %v658 = vld [vmem:[#allocation6 + $0x130] sm:$0xf]
          %v659 = vld [vmem:[#allocation6 + $0x134] sm:$0xf]
          %v660 = vld [vmem:[#allocation6 + $0x138] sm:$0xf]
          %v661 = vld [vmem:[#allocation6 + $0x13c] sm:$0xf]
          %v662 = vld [vmem:[#allocation6 + $0x140] sm:$0xf]
          %v663 = vld [vmem:[#allocation6 + $0x144] sm:$0xf]
          %v664 = vld [vmem:[#allocation6 + $0x148] sm:$0xf]
          %v665 = vld [vmem:[#allocation6 + $0x14c] sm:$0xf]
          %v666 = vld [vmem:[#allocation6 + $0x150] sm:$0xf]
          %v667 = vld [vmem:[#allocation6 + $0x154] sm:$0xf]
          %v668 = vld [vmem:[#allocation6 + $0x158] sm:$0xf]
          %v669 = vld [vmem:[#allocation6 + $0x15c] sm:$0xf]
          %v670 = vld [vmem:[#allocation6 + $0x160] sm:$0xf]
          %v671 = vld [vmem:[#allocation6 + $0x164] sm:$0xf]
          %v672 = vld [vmem:[#allocation6 + $0x168] sm:$0xf]
          %v673 = vld [vmem:[#allocation6 + $0x16c] sm:$0xf]
          %v674 = vld [vmem:[#allocation6 + $0x170] sm:$0xf]
          %v675 = vld [vmem:[#allocation6 + $0x174] sm:$0xf]
          %v676 = vld [vmem:[#allocation6 + $0x178] sm:$0xf]
          %v677 = vld [vmem:[#allocation6 + $0x17c] sm:$0xf]
          %v678 = vld [vmem:[#allocation6 + $0x180] sm:$0xf]
          %v679 = vld [vmem:[#allocation6 + $0x184] sm:$0xf]
          %v680 = vld [vmem:[#allocation6 + $0x188] sm:$0xf]
          %v681 = vld [vmem:[#allocation6 + $0x18c] sm:$0xf]
          %v682 = vld [vmem:[#allocation6 + $0x190] sm:$0xf]
          %v683 = vld [vmem:[#allocation6 + $0x194] sm:$0xf]
          %v684 = vld [vmem:[#allocation6 + $0x198] sm:$0xf]
          %v685 = vld [vmem:[#allocation6 + $0x19c] sm:$0xf]
          %v686 = vld [vmem:[#allocation6 + $0x1a0] sm:$0xf]
          %v687 = vld [vmem:[#allocation6 + $0x1a4] sm:$0xf]
          %v688 = vld [vmem:[#allocation6 + $0x1a8] sm:$0xf]
          %v689 = vld [vmem:[#allocation6 + $0x1ac] sm:$0xf]
          %v690 = vld [vmem:[#allocation6 + $0x1b0] sm:$0xf]
          %v691 = vld [vmem:[#allocation6 + $0x1b4] sm:$0xf]
          %v692 = vld [vmem:[#allocation6 + $0x1b8] sm:$0xf]
          %v693 = vld [vmem:[#allocation6 + $0x1bc] sm:$0xf]
          %v694 = vld [vmem:[#allocation6 + $0x1c0] sm:$0xf]
          %v695 = vld [vmem:[#allocation6 + $0x1c4] sm:$0xf]
          %v696 = vld [vmem:[#allocation6 + $0x1c8] sm:$0xf]
          %v697 = vld [vmem:[#allocation6 + $0x1cc] sm:$0xf]
          %v698 = vld [vmem:[#allocation6 + $0x1d0] sm:$0xf]
          %v699 = vld [vmem:[#allocation6 + $0x1d4] sm:$0xf]
          %v700 = vld [vmem:[#allocation6 + $0x1d8] sm:$0xf]
          %v701 = vld [vmem:[#allocation6 + $0x1dc] sm:$0xf]
          %v702 = vld [vmem:[#allocation6 + $0x1e0] sm:$0xf]
          %v703 = vld [vmem:[#allocation6 + $0x1e4] sm:$0xf]
          %v704 = vld [vmem:[#allocation6 + $0x1e8] sm:$0xf]
          %v705 = vld [vmem:[#allocation6 + $0x1ec] sm:$0xf]
          %v706 = vld [vmem:[#allocation6 + $0x1f0] sm:$0xf]
          %v707 = vld [vmem:[#allocation6 + $0x1f4] sm:$0xf]
          %v708 = vld [vmem:[#allocation6 + $0x1f8] sm:$0xf]
          %v709 = vld [vmem:[#allocation6 + $0x1fc] sm:$0xf]
          %v710 = vld [vmem:[#allocation8] sm:$0x1]
          %v712 = vlaneseq
          %v713 = vshrl.u32 %v712, 7
          %v714 = vsub.s32 0, %v713
          %v715 = vrot.slane %v710, %v714
          %v845 = vunpack.c.l.b16 %v582
          %v846 = vunpack.c.l.b16 %v583
          %v847 = vunpack.c.l.b16 %v584
          %v848 = vunpack.c.l.b16 %v585
          %v849 = vunpack.c.l.b16 %v586
          %v850 = vunpack.c.l.b16 %v587
          %v851 = vunpack.c.l.b16 %v588
          %v852 = vunpack.c.l.b16 %v589
          %v853 = vunpack.c.l.b16 %v590
          %v854 = vunpack.c.l.b16 %v591
          %v855 = vunpack.c.l.b16 %v592
          %v856 = vunpack.c.l.b16 %v593
          %v857 = vunpack.c.l.b16 %v594
          %v858 = vunpack.c.l.b16 %v595
          %v859 = vunpack.c.l.b16 %v596
          %v860 = vunpack.c.l.b16 %v597
          %v861 = vunpack.c.l.b16 %v598
          %v862 = vunpack.c.l.b16 %v599
          %v863 = vunpack.c.l.b16 %v600
          %v864 = vunpack.c.l.b16 %v601
          %v865 = vunpack.c.l.b16 %v602
          %v866 = vunpack.c.l.b16 %v603
          %v867 = vunpack.c.l.b16 %v604
          %v868 = vunpack.c.l.b16 %v605
          %v869 = vunpack.c.l.b16 %v606
          %v870 = vunpack.c.l.b16 %v607
          %v871 = vunpack.c.l.b16 %v608
          %v872 = vunpack.c.l.b16 %v609
          %v873 = vunpack.c.l.b16 %v610
          %v874 = vunpack.c.l.b16 %v611
          %v875 = vunpack.c.l.b16 %v612
          %v876 = vunpack.c.l.b16 %v613
          %v877 = vunpack.c.l.b16 %v614
          %v878 = vunpack.c.l.b16 %v615
          %v879 = vunpack.c.l.b16 %v616
          %v880 = vunpack.c.l.b16 %v617
          %v881 = vunpack.c.l.b16 %v618
          %v882 = vunpack.c.l.b16 %v619
          %v883 = vunpack.c.l.b16 %v620
          %v884 = vunpack.c.l.b16 %v621
          %v885 = vunpack.c.l.b16 %v622
          %v886 = vunpack.c.l.b16 %v623
          %v887 = vunpack.c.l.b16 %v624
          %v888 = vunpack.c.l.b16 %v625
          %v889 = vunpack.c.l.b16 %v626
          %v890 = vunpack.c.l.b16 %v627
          %v891 = vunpack.c.l.b16 %v628
          %v892 = vunpack.c.l.b16 %v629
          %v893 = vunpack.c.l.b16 %v630
          %v894 = vunpack.c.l.b16 %v631
          %v895 = vunpack.c.l.b16 %v632
          %v896 = vunpack.c.l.b16 %v633
          %v897 = vunpack.c.l.b16 %v634
          %v898 = vunpack.c.l.b16 %v635
          %v899 = vunpack.c.l.b16 %v636
          %v900 = vunpack.c.l.b16 %v637
          %v901 = vunpack.c.l.b16 %v638
          %v902 = vunpack.c.l.b16 %v639
          %v903 = vunpack.c.l.b16 %v640
          %v904 = vunpack.c.l.b16 %v641
          %v905 = vunpack.c.l.b16 %v642
          %v906 = vunpack.c.l.b16 %v643
          %v907 = vunpack.c.l.b16 %v644
          %v908 = vunpack.c.l.b16 %v645
          %v909 = vunpack.c.l.b16 %v646
          %v910 = vunpack.c.l.b16 %v647
          %v911 = vunpack.c.l.b16 %v648
          %v912 = vunpack.c.l.b16 %v649
          %v913 = vunpack.c.l.b16 %v650
          %v914 = vunpack.c.l.b16 %v651
          %v915 = vunpack.c.l.b16 %v652
          %v916 = vunpack.c.l.b16 %v653
          %v917 = vunpack.c.l.b16 %v654
          %v918 = vunpack.c.l.b16 %v655
          %v919 = vunpack.c.l.b16 %v656
          %v920 = vunpack.c.l.b16 %v657
          %v921 = vunpack.c.l.b16 %v658
          %v922 = vunpack.c.l.b16 %v659
          %v923 = vunpack.c.l.b16 %v660
          %v924 = vunpack.c.l.b16 %v661
          %v925 = vunpack.c.l.b16 %v662
          %v926 = vunpack.c.l.b16 %v663
          %v927 = vunpack.c.l.b16 %v664
          %v928 = vunpack.c.l.b16 %v665
          %v929 = vunpack.c.l.b16 %v666
          %v930 = vunpack.c.l.b16 %v667
          %v931 = vunpack.c.l.b16 %v668
          %v932 = vunpack.c.l.b16 %v669
          %v933 = vunpack.c.l.b16 %v670
          %v934 = vunpack.c.l.b16 %v671
          %v935 = vunpack.c.l.b16 %v672
          %v936 = vunpack.c.l.b16 %v673
          %v937 = vunpack.c.l.b16 %v674
          %v938 = vunpack.c.l.b16 %v675
          %v939 = vunpack.c.l.b16 %v676
          %v940 = vunpack.c.l.b16 %v677
          %v941 = vunpack.c.l.b16 %v678
          %v942 = vunpack.c.l.b16 %v679
          %v943 = vunpack.c.l.b16 %v680
          %v944 = vunpack.c.l.b16 %v681
          %v945 = vunpack.c.l.b16 %v682
          %v946 = vunpack.c.l.b16 %v683
          %v947 = vunpack.c.l.b16 %v684
          %v948 = vunpack.c.l.b16 %v685
          %v949 = vunpack.c.l.b16 %v686
          %v950 = vunpack.c.l.b16 %v687
          %v951 = vunpack.c.l.b16 %v688
          %v952 = vunpack.c.l.b16 %v689
          %v953 = vunpack.c.l.b16 %v690
          %v954 = vunpack.c.l.b16 %v691
          %v955 = vunpack.c.l.b16 %v692
          %v956 = vunpack.c.l.b16 %v693
          %v957 = vunpack.c.l.b16 %v694
          %v958 = vunpack.c.l.b16 %v695
          %v959 = vunpack.c.l.b16 %v696
          %v960 = vunpack.c.l.b16 %v697
          %v961 = vunpack.c.l.b16 %v698
          %v962 = vunpack.c.l.b16 %v699
          %v963 = vunpack.c.l.b16 %v700
          %v964 = vunpack.c.l.b16 %v701
          %v965 = vunpack.c.l.b16 %v702
          %v966 = vunpack.c.l.b16 %v703
          %v967 = vunpack.c.l.b16 %v704
          %v968 = vunpack.c.l.b16 %v705
          %v969 = vunpack.c.l.b16 %v706
          %v970 = vunpack.c.l.b16 %v707
          %v971 = vunpack.c.l.b16 %v708
          %v972 = vunpack.c.l.b16 %v709
          %v973 = vpack.c.b16 %v846, %v845
          %v974 = vpack.c.b16 %v848, %v847
          %v975 = vpack.c.b16 %v850, %v849
          %v976 = vpack.c.b16 %v852, %v851
          %v977 = vpack.c.b16 %v854, %v853
          %v978 = vpack.c.b16 %v856, %v855
          %v979 = vpack.c.b16 %v858, %v857
          %v980 = vpack.c.b16 %v860, %v859
          %v981 = vpack.c.b16 %v862, %v861
          %v982 = vpack.c.b16 %v864, %v863
          %v983 = vpack.c.b16 %v866, %v865
          %v984 = vpack.c.b16 %v868, %v867
          %v985 = vpack.c.b16 %v870, %v869
          %v986 = vpack.c.b16 %v872, %v871
          %v987 = vpack.c.b16 %v874, %v873
          %v988 = vpack.c.b16 %v876, %v875
          %v989 = vpack.c.b16 %v878, %v877
          %v990 = vpack.c.b16 %v880, %v879
          %v991 = vpack.c.b16 %v882, %v881
          %v992 = vpack.c.b16 %v884, %v883
          %v993 = vpack.c.b16 %v886, %v885
          %v994 = vpack.c.b16 %v888, %v887
          %v995 = vpack.c.b16 %v890, %v889
          %v996 = vpack.c.b16 %v892, %v891
          %v997 = vpack.c.b16 %v894, %v893
          %v998 = vpack.c.b16 %v896, %v895
          %v999 = vpack.c.b16 %v898, %v897
          %v1000 = vpack.c.b16 %v900, %v899
          %v1001 = vpack.c.b16 %v902, %v901
          %v1002 = vpack.c.b16 %v904, %v903
          %v1003 = vpack.c.b16 %v906, %v905
          %v1004 = vpack.c.b16 %v908, %v907
          %v1005 = vpack.c.b16 %v910, %v909
          %v1006 = vpack.c.b16 %v912, %v911
          %v1007 = vpack.c.b16 %v914, %v913
          %v1008 = vpack.c.b16 %v916, %v915
          %v1009 = vpack.c.b16 %v918, %v917
          %v1010 = vpack.c.b16 %v920, %v919
          %v1011 = vpack.c.b16 %v922, %v921
          %v1012 = vpack.c.b16 %v924, %v923
          %v1013 = vpack.c.b16 %v926, %v925
          %v1014 = vpack.c.b16 %v928, %v927
          %v1015 = vpack.c.b16 %v930, %v929
          %v1016 = vpack.c.b16 %v932, %v931
          %v1017 = vpack.c.b16 %v934, %v933
          %v1018 = vpack.c.b16 %v936, %v935
          %v1019 = vpack.c.b16 %v938, %v937
          %v1020 = vpack.c.b16 %v940, %v939
          %v1021 = vpack.c.b16 %v942, %v941
          %v1022 = vpack.c.b16 %v944, %v943
          %v1023 = vpack.c.b16 %v946, %v945
          %v1024 = vpack.c.b16 %v948, %v947
          %v1025 = vpack.c.b16 %v950, %v949
          %v1026 = vpack.c.b16 %v952, %v951
          %v1027 = vpack.c.b16 %v954, %v953
          %v1028 = vpack.c.b16 %v956, %v955
          %v1029 = vpack.c.b16 %v958, %v957
          %v1030 = vpack.c.b16 %v960, %v959
          %v1031 = vpack.c.b16 %v962, %v961
          %v1032 = vpack.c.b16 %v964, %v963
          %v1033 = vpack.c.b16 %v966, %v965
          %v1034 = vpack.c.b16 %v968, %v967
          %v1035 = vpack.c.b16 %v970, %v969
          %v1036 = vpack.c.b16 %v972, %v971
          %1101 = vmatprep.subr.bf16.mxu0 0
          %1102 = vmatpush1.bf16.msra.mxu0 %v973
          %1103 = vmatprep.subr.bf16.mxu0 0
          %1104 = vmatpush1.bf16.msra.mxu0 %v974
          %1105 = vmatprep.subr.bf16.mxu0 0
          %1106 = vmatpush1.bf16.msra.mxu0 %v975
          %1107 = vmatprep.subr.bf16.mxu0 0
          %1108 = vmatpush1.bf16.msra.mxu0 %v976
          %1109 = vmatprep.subr.bf16.mxu0 0
          %1110 = vmatpush1.bf16.msra.mxu0 %v977
          %1111 = vmatprep.subr.bf16.mxu0 0
          %1112 = vmatpush1.bf16.msra.mxu0 %v978
          %1113 = vmatprep.subr.bf16.mxu0 0
          %1114 = vmatpush1.bf16.msra.mxu0 %v979
          %1115 = vmatprep.subr.bf16.mxu0 0
          %1116 = vmatpush1.bf16.msra.mxu0 %v980
          %1117 = vmatprep.subr.bf16.mxu0 0
          %1118 = vmatpush1.bf16.msra.mxu0 %v981
          %1119 = vmatprep.subr.bf16.mxu0 0
          %1120 = vmatpush1.bf16.msra.mxu0 %v982
          %1121 = vmatprep.subr.bf16.mxu0 0
          %1122 = vmatpush1.bf16.msra.mxu0 %v983
          %1123 = vmatprep.subr.bf16.mxu0 0
          %1124 = vmatpush1.bf16.msra.mxu0 %v984
          %1125 = vmatprep.subr.bf16.mxu0 0
          %1126 = vmatpush1.bf16.msra.mxu0 %v985
          %1127 = vmatprep.subr.bf16.mxu0 0
          %1128 = vmatpush1.bf16.msra.mxu0 %v986
          %1129 = vmatprep.subr.bf16.mxu0 0
          %1130 = vmatpush1.bf16.msra.mxu0 %v987
          %1131 = vmatprep.subr.bf16.mxu0 0
          %1132 = vmatpush1.bf16.msra.mxu0 %v988
          %1133 = vmatprep.mubr.bf16.mxu0 %v575
          %1134 = vmatmul.mubr.bf16.gmra.mrb[0].mxu0 %v574
          %v1135 = vpop.f32.mrb[0].mxu0
          %v1136 = vadd.f32 %v715, %v1135
          %v1137 = vpop.f32.mrb[0].mxu0
          %v1138 = vpop.f32.mrb[0].mxu0
          %v1139 = vpop.f32.mrb[0].mxu0
          %1140 = vdwg.mxu0
          %1141 = vmatprep.subr.bf16.mxu0 0
          %1142 = vmatpush1.bf16.msra.mxu0 %v989
          %1143 = vmatprep.subr.bf16.mxu0 0
          %1144 = vmatpush1.bf16.msra.mxu0 %v990
          %1145 = vmatprep.subr.bf16.mxu0 0
          %1146 = vmatpush1.bf16.msra.mxu0 %v991
          %1147 = vmatprep.subr.bf16.mxu0 0
          %1148 = vmatpush1.bf16.msra.mxu0 %v992
          %1149 = vmatprep.subr.bf16.mxu0 0
          %1150 = vmatpush1.bf16.msra.mxu0 %v993
          %1151 = vmatprep.subr.bf16.mxu0 0
          %1152 = vmatpush1.bf16.msra.mxu0 %v994
          %1153 = vmatprep.subr.bf16.mxu0 0
          %1154 = vmatpush1.bf16.msra.mxu0 %v995
          %1155 = vmatprep.subr.bf16.mxu0 0
          %1156 = vmatpush1.bf16.msra.mxu0 %v996
          %1157 = vmatprep.subr.bf16.mxu0 0
          %1158 = vmatpush1.bf16.msra.mxu0 %v997
          %1159 = vmatprep.subr.bf16.mxu0 0
          %1160 = vmatpush1.bf16.msra.mxu0 %v998
          %1161 = vmatprep.subr.bf16.mxu0 0
          %1162 = vmatpush1.bf16.msra.mxu0 %v999
          %1163 = vmatprep.subr.bf16.mxu0 0
          %1164 = vmatpush1.bf16.msra.mxu0 %v1000
          %1165 = vmatprep.subr.bf16.mxu0 0
          %1166 = vmatpush1.bf16.msra.mxu0 %v1001
          %1167 = vmatprep.subr.bf16.mxu0 0
          %1168 = vmatpush1.bf16.msra.mxu0 %v1002
          %1169 = vmatprep.subr.bf16.mxu0 0
          %1170 = vmatpush1.bf16.msra.mxu0 %v1003
          %1171 = vmatprep.subr.bf16.mxu0 0
          %1172 = vmatpush1.bf16.msra.mxu0 %v1004
          %1173 = vmatprep.mubr.bf16.mxu0 %v577
          %1174 = vmatmul.mubr.bf16.gmra.mrb[0].mxu0 %v576
          %v1175 = vpop.f32.mrb[0].mxu0
          %v1176 = vadd.f32 %v1136, %v1175
          %v1177 = vpop.f32.mrb[0].mxu0
          %v1178 = vpop.f32.mrb[0].mxu0
          %v1179 = vpop.f32.mrb[0].mxu0
          %1180 = vdwg.mxu0
          %1181 = vmatprep.subr.bf16.mxu0 0
          %1182 = vmatpush1.bf16.msra.mxu0 %v1005
          %1183 = vmatprep.subr.bf16.mxu0 0
          %1184 = vmatpush1.bf16.msra.mxu0 %v1006
          %1185 = vmatprep.subr.bf16.mxu0 0
          %1186 = vmatpush1.bf16.msra.mxu0 %v1007
          %1187 = vmatprep.subr.bf16.mxu0 0
          %1188 = vmatpush1.bf16.msra.mxu0 %v1008
          %1189 = vmatprep.subr.bf16.mxu0 0
          %1190 = vmatpush1.bf16.msra.mxu0 %v1009
          %1191 = vmatprep.subr.bf16.mxu0 0
          %1192 = vmatpush1.bf16.msra.mxu0 %v1010
          %1193 = vmatprep.subr.bf16.mxu0 0
          %1194 = vmatpush1.bf16.msra.mxu0 %v1011
          %1195 = vmatprep.subr.bf16.mxu0 0
          %1196 = vmatpush1.bf16.msra.mxu0 %v1012
          %1197 = vmatprep.subr.bf16.mxu0 0
          %1198 = vmatpush1.bf16.msra.mxu0 %v1013
          %1199 = vmatprep.subr.bf16.mxu0 0
          %1200 = vmatpush1.bf16.msra.mxu0 %v1014
          %1201 = vmatprep.subr.bf16.mxu0 0
          %1202 = vmatpush1.bf16.msra.mxu0 %v1015
          %1203 = vmatprep.subr.bf16.mxu0 0
          %1204 = vmatpush1.bf16.msra.mxu0 %v1016
          %1205 = vmatprep.subr.bf16.mxu0 0
          %1206 = vmatpush1.bf16.msra.mxu0 %v1017
          %1207 = vmatprep.subr.bf16.mxu0 0
          %1208 = vmatpush1.bf16.msra.mxu0 %v1018
          %1209 = vmatprep.subr.bf16.mxu0 0
          %1210 = vmatpush1.bf16.msra.mxu0 %v1019
          %1211 = vmatprep.subr.bf16.mxu0 0
          %1212 = vmatpush1.bf16.msra.mxu0 %v1020
          %1213 = vmatprep.mubr.bf16.mxu0 %v579
          %1214 = vmatmul.mubr.bf16.gmra.mrb[0].mxu0 %v578
          %v1215 = vpop.f32.mrb[0].mxu0
          %v1216 = vadd.f32 %v1176, %v1215
          %v1217 = vpop.f32.mrb[0].mxu0
          %v1218 = vpop.f32.mrb[0].mxu0
          %v1219 = vpop.f32.mrb[0].mxu0
          %1220 = vdwg.mxu0
          %1221 = vmatprep.subr.bf16.mxu0 0
          %1222 = vmatpush1.bf16.msra.mxu0 %v1021
          %1223 = vmatprep.subr.bf16.mxu0 0
          %1224 = vmatpush1.bf16.msra.mxu0 %v1022
          %1225 = vmatprep.subr.bf16.mxu0 0
          %1226 = vmatpush1.bf16.msra.mxu0 %v1023
          %1227 = vmatprep.subr.bf16.mxu0 0
          %1228 = vmatpush1.bf16.msra.mxu0 %v1024
          %1229 = vmatprep.subr.bf16.mxu0 0
          %1230 = vmatpush1.bf16.msra.mxu0 %v1025
          %1231 = vmatprep.subr.bf16.mxu0 0
          %1232 = vmatpush1.bf16.msra.mxu0 %v1026
          %1233 = vmatprep.subr.bf16.mxu0 0
          %1234 = vmatpush1.bf16.msra.mxu0 %v1027
          %1235 = vmatprep.subr.bf16.mxu0 0
          %1236 = vmatpush1.bf16.msra.mxu0 %v1028
          %1237 = vmatprep.subr.bf16.mxu0 0
          %1238 = vmatpush1.bf16.msra.mxu0 %v1029
          %1239 = vmatprep.subr.bf16.mxu0 0
          %1240 = vmatpush1.bf16.msra.mxu0 %v1030
          %1241 = vmatprep.subr.bf16.mxu0 0
          %1242 = vmatpush1.bf16.msra.mxu0 %v1031
          %1243 = vmatprep.subr.bf16.mxu0 0
          %1244 = vmatpush1.bf16.msra.mxu0 %v1032
          %1245 = vmatprep.subr.bf16.mxu0 0
          %1246 = vmatpush1.bf16.msra.mxu0 %v1033
          %1247 = vmatprep.subr.bf16.mxu0 0
          %1248 = vmatpush1.bf16.msra.mxu0 %v1034
          %1249 = vmatprep.subr.bf16.mxu0 0
          %1250 = vmatpush1.bf16.msra.mxu0 %v1035
          %1251 = vmatprep.subr.bf16.mxu0 0
          %1252 = vmatpush1.bf16.msra.mxu0 %v1036
          %1253 = vmatprep.mubr.bf16.mxu0 %v581
          %1254 = vmatmul.mubr.bf16.gmra.mrb[0].mxu0 %v580
          %v1255 = vpop.f32.mrb[0].mxu0
          %v1256 = vadd.f32 %v1216, %v1255
          %v1257 = vpop.f32.mrb[0].mxu0
          %v1258 = vpop.f32.mrb[0].mxu0
          %v1259 = vpop.f32.mrb[0].mxu0
          %1260 = vdwg.mxu0
          %v1261 = vmax.f32 %v1256, 0.0
          %1262 = vadd.xlane.f32.xlu0 %v1261
          %v1263 = vpop.xlane.xlu0 %1262
          %v1264 = vrcp.pop 128.0
          %v1265 = vmul.f32 %v1263, %v1264
          %v1266 = vsub.f32 %v1261, %v1265
          %v1267 = vmul.f32 %v1266, %v1266
          %1268 = vadd.xlane.f32.xlu0 %v1267
          %v1269 = vpop.xlane.xlu0 %1268
          %v1270 = vmul.f32 %v1269, %v1264
          %v1271 = vadd.f32 %v1270, 1e-06
          %v1272 = vrsqrt.pop %v1271
          %v1273 = vmul.f32 %v1266, %v1272
          %v1274 = vpack.c.bf16 %v1273, %v1273
          %v1275 = vld [vmem:[#allocation9] sm:$0xf]
          %v1276 = vld [vmem:[#allocation9 + $0x4] sm:$0xf]
          %v1277 = vld [vmem:[#allocation9 + $0x8] sm:$0xf]
          %v1278 = vld [vmem:[#allocation9 + $0xc] sm:$0xf]
          %v1279 = vld [vmem:[#allocation9 + $0x10] sm:$0xf]
          %v1280 = vld [vmem:[#allocation9 + $0x14] sm:$0xf]
          %v1281 = vld [vmem:[#allocation9 + $0x18] sm:$0xf]
          %v1282 = vld [vmem:[#allocation9 + $0x1c] sm:$0xf]
          %v1283 = vld [vmem:[#allocation9 + $0x20] sm:$0xf]
          %v1284 = vld [vmem:[#allocation9 + $0x24] sm:$0xf]
          %v1285 = vld [vmem:[#allocation9 + $0x28] sm:$0xf]
          %v1286 = vld [vmem:[#allocation9 + $0x2c] sm:$0xf]
          %v1287 = vld [vmem:[#allocation9 + $0x30] sm:$0xf]
          %v1288 = vld [vmem:[#allocation9 + $0x34] sm:$0xf]
          %v1289 = vld [vmem:[#allocation9 + $0x38] sm:$0xf]
          %v1290 = vld [vmem:[#allocation9 + $0x3c] sm:$0xf]
          %v1307 = vunpack.c.l.b16 %v1275
          %v1308 = vunpack.c.l.b16 %v1276
          %v1309 = vunpack.c.l.b16 %v1277
          %v1310 = vunpack.c.l.b16 %v1278
          %v1311 = vunpack.c.l.b16 %v1279
          %v1312 = vunpack.c.l.b16 %v1280
          %v1313 = vunpack.c.l.b16 %v1281
          %v1314 = vunpack.c.l.b16 %v1282
          %v1315 = vunpack.c.l.b16 %v1283
          %v1316 = vunpack.c.l.b16 %v1284
          %v1317 = vunpack.c.l.b16 %v1285
          %v1318 = vunpack.c.l.b16 %v1286
          %v1319 = vunpack.c.l.b16 %v1287
          %v1320 = vunpack.c.l.b16 %v1288
          %v1321 = vunpack.c.l.b16 %v1289
          %v1322 = vunpack.c.l.b16 %v1290
          %v1323 = vpack.c.b16 %v1308, %v1307
          %v1324 = vpack.c.b16 %v1310, %v1309
          %v1325 = vpack.c.b16 %v1312, %v1311
          %v1326 = vpack.c.b16 %v1314, %v1313
          %v1327 = vpack.c.b16 %v1316, %v1315
          %v1328 = vpack.c.b16 %v1318, %v1317
          %v1329 = vpack.c.b16 %v1320, %v1319
          %v1330 = vpack.c.b16 %v1322, %v1321
          %1339 = vmatprep.subr.bf16.mxu0 0
          %1340 = vmatpush1.bf16.msra.mxu0 %v1323
          %1341 = vmatprep.subr.bf16.mxu0 0
          %1342 = vmatpush1.bf16.msra.mxu0 %v1324
          %1343 = vmatprep.subr.bf16.mxu0 0
          %1344 = vmatpush1.bf16.msra.mxu0 %v1325
          %1345 = vmatprep.subr.bf16.mxu0 0
          %1346 = vmatpush1.bf16.msra.mxu0 %v1326
          %1347 = vmatprep.subr.bf16.mxu0 0
          %1348 = vmatpush1.bf16.msra.mxu0 %v1327
          %1349 = vmatprep.subr.bf16.mxu0 0
          %1350 = vmatpush1.bf16.msra.mxu0 %v1328
          %1351 = vmatprep.subr.bf16.mxu0 0
          %1352 = vmatpush1.bf16.msra.mxu0 %v1329
          %1353 = vmatprep.subr.bf16.mxu0 0
          %1354 = vmatpush1.bf16.msra.mxu0 %v1330
          %1355 = vmatprep.subr.bf16.mxu0 0
          %1356 = vmatpush1.bf16.msra.mxu0 0
          %1357 = vmatprep.subr.bf16.mxu0 0
          %1358 = vmatpush1.bf16.msra.mxu0 0
          %1359 = vmatprep.subr.bf16.mxu0 0
          %1360 = vmatpush1.bf16.msra.mxu0 0
          %1361 = vmatprep.subr.bf16.mxu0 0
          %1362 = vmatpush1.bf16.msra.mxu0 0
          %1363 = vmatprep.subr.bf16.mxu0 0
          %1364 = vmatpush1.bf16.msra.mxu0 0
          %1365 = vmatprep.subr.bf16.mxu0 0
          %1366 = vmatpush1.bf16.msra.mxu0 0
          %1367 = vmatprep.subr.bf16.mxu0 0
          %1368 = vmatpush1.bf16.msra.mxu0 0
          %1369 = vmatprep.subr.bf16.mxu0 0
          %1370 = vmatpush1.bf16.msra.mxu0 0
          %1371 = vmatprep.mubr.bf16.mxu0 0
          %1372 = vmatmul.mubr.bf16.gmra.mrb[0].mxu0 %v1274
          %v1373 = vpop.f32.mrb[0].mxu0
          %v1374 = vadd.f32 0.0, %v1373
          %v1375 = vpop.f32.mrb[0].mxu0
          %v1376 = vpop.f32.mrb[0].mxu0
          %v1377 = vpop.f32.mrb[0].mxu0
          %1378 = vdwg.mxu0
          %1379 = vmax.xlane.f32.xlu0 %v1374
          %v1380 = vpop.xlane.xlu0 %1379
          %v1381 = vsub.f32 %v1374, %v1380
          %v1382 = vmul.f32 %v1381, 1.442695
          %v1383 = vpow.pop %v1382
          %1384 = vadd.xlane.f32.xlu0 %v1383
          %v1385 = vpop.xlane.xlu0 %1384
          %v1386 = vrcp.pop %v1385
          %v1387 = vmul.f32 %v1383, %v1386
          %v1388 = vpack.c.bf16 %v1387, %v1387
          %v1389 = vld [vmem:[#allocation11] sm:$0xf]
          %v1390 = vld [vmem:[#allocation11 + $0x4] sm:$0xf]
          %v1391 = vld [vmem:[#allocation11 + $0x8] sm:$0xf]
          %v1392 = vld [vmem:[#allocation11 + $0xc] sm:$0xf]
          %v1393 = vld [vmem:[#allocation11 + $0x10] sm:$0xf]
          %v1394 = vld [vmem:[#allocation11 + $0x14] sm:$0xf]
          %v1395 = vld [vmem:[#allocation11 + $0x18] sm:$0xf]
          %v1396 = vld [vmem:[#allocation11 + $0x1c] sm:$0xf]
          %v1397 = vld [vmem:[#allocation11 + $0x20] sm:$0xf]
          %v1398 = vld [vmem:[#allocation11 + $0x24] sm:$0xf]
          %v1399 = vld [vmem:[#allocation11 + $0x28] sm:$0xf]
          %v1400 = vld [vmem:[#allocation11 + $0x2c] sm:$0xf]
          %v1401 = vld [vmem:[#allocation11 + $0x30] sm:$0xf]
          %v1402 = vld [vmem:[#allocation11 + $0x34] sm:$0xf]
          %v1403 = vld [vmem:[#allocation11 + $0x38] sm:$0xf]
          %v1404 = vld [vmem:[#allocation11 + $0x3c] sm:$0xf]
          %v1421 = vunpack.c.l.b16 %v1389
          %v1422 = vunpack.c.l.b16 %v1390
          %v1423 = vunpack.c.l.b16 %v1391
          %v1424 = vunpack.c.l.b16 %v1392
          %v1425 = vunpack.c.l.b16 %v1393
          %v1426 = vunpack.c.l.b16 %v1394
          %v1427 = vunpack.c.l.b16 %v1395
          %v1428 = vunpack.c.l.b16 %v1396
          %v1429 = vunpack.c.l.b16 %v1397
          %v1430 = vunpack.c.l.b16 %v1398
          %v1431 = vunpack.c.l.b16 %v1399
          %v1432 = vunpack.c.l.b16 %v1400
          %v1433 = vunpack.c.l.b16 %v1401
          %v1434 = vunpack.c.l.b16 %v1402
          %v1435 = vunpack.c.l.b16 %v1403
          %v1436 = vunpack.c.l.b16 %v1404
          %v1437 = vpack.c.b16 %v1422, %v1421
          %v1438 = vpack.c.b16 %v1424, %v1423
          %v1439 = vpack.c.b16 %v1426, %v1425
          %v1440 = vpack.c.b16 %v1428, %v1427
          %v1441 = vpack.c.b16 %v1430, %v1429
          %v1442 = vpack.c.b16 %v1432, %v1431
          %v1443 = vpack.c.b16 %v1434, %v1433
          %v1444 = vpack.c.b16 %v1436, %v1435
          %1453 = vmatprep.subr.bf16.mxu0 0
          %1454 = vmatpush1.bf16.msra.mxu0 %v1437
          %1455 = vmatprep.subr.bf16.mxu0 0
          %1456 = vmatpush1.bf16.msra.mxu0 %v1438
          %1457 = vmatprep.subr.bf16.mxu0 0
          %1458 = vmatpush1.bf16.msra.mxu0 %v1439
          %1459 = vmatprep.subr.bf16.mxu0 0
          %1460 = vmatpush1.bf16.msra.mxu0 %v1440
          %1461 = vmatprep.subr.bf16.mxu0 0
          %1462 = vmatpush1.bf16.msra.mxu0 %v1441
          %1463 = vmatprep.subr.bf16.mxu0 0
          %1464 = vmatpush1.bf16.msra.mxu0 %v1442
          %1465 = vmatprep.subr.bf16.mxu0 0
          %1466 = vmatpush1.bf16.msra.mxu0 %v1443
          %1467 = vmatprep.subr.bf16.mxu0 0
          %1468 = vmatpush1.bf16.msra.mxu0 %v1444
          %1469 = vmatprep.subr.bf16.mxu0 0
          %1470 = vmatpush1.bf16.msra.mxu0 0
          %1471 = vmatprep.subr.bf16.mxu0 0
          %1472 = vmatpush1.bf16.msra.mxu0 0
          %1473 = vmatprep.subr.bf16.mxu0 0
          %1474 = vmatpush1.bf16.msra.mxu0 0
          %1475 = vmatprep.subr.bf16.mxu0 0
          %1476 = vmatpush1.bf16.msra.mxu0 0
          %1477 = vmatprep.subr.bf16.mxu0 0
          %1478 = vmatpush1.bf16.msra.mxu0 0
          %1479 = vmatprep.subr.bf16.mxu0 0
          %1480 = vmatpush1.bf16.msra.mxu0 0
          %1481 = vmatprep.subr.bf16.mxu0 0
          %1482 = vmatpush1.bf16.msra.mxu0 0
          %1483 = vmatprep.subr.bf16.mxu0 0
          %1484 = vmatpush1.bf16.msra.mxu0 0
          %1485 = vmatprep.mubr.bf16.mxu0 0
          %1486 = vmatmul.mubr.bf16.gmra.mrb[0].mxu0 %v1388
          %v1487 = vpop.f32.mrb[0].mxu0
          %v1488 = vadd.f32 0.0, %v1487
          %v1489 = vpop.f32.mrb[0].mxu0
          %v1490 = vpop.f32.mrb[0].mxu0
          %v1491 = vpop.f32.mrb[0].mxu0
          %1492 = vdwg.mxu0
          %v1493 = vadd.f32 %v1273, %v1488
          %v1494 = vpack.c.bf16 %v1493, %v1493
          %v1495 = vld [vmem:[#allocation12] sm:$0xff]
          %v1496 = vld [vmem:[#allocation12 + $0x8] sm:$0xff]
          %v1497 = vld [vmem:[#allocation12 + $0x10] sm:$0xff]
          %v1498 = vld [vmem:[#allocation12 + $0x18] sm:$0xff]
          %v1499 = vld [vmem:[#allocation12 + $0x20] sm:$0xff]
          %v1500 = vld [vmem:[#allocation12 + $0x28] sm:$0xff]
          %v1501 = vld [vmem:[#allocation12 + $0x30] sm:$0xff]
          %v1502 = vld [vmem:[#allocation12 + $0x38] sm:$0xff]
          %v1503 = vld [vmem:[#allocation12 + $0x40] sm:$0xff]
          %v1504 = vld [vmem:[#allocation12 + $0x48] sm:$0xff]
          %v1505 = vld [vmem:[#allocation12 + $0x50] sm:$0xff]
          %v1506 = vld [vmem:[#allocation12 + $0x58] sm:$0xff]
          %v1507 = vld [vmem:[#allocation12 + $0x60] sm:$0xff]
          %v1508 = vld [vmem:[#allocation12 + $0x68] sm:$0xff]
          %v1509 = vld [vmem:[#allocation12 + $0x70] sm:$0xff]
          %v1510 = vld [vmem:[#allocation12 + $0x78] sm:$0xff]
          %v1511 = vld [vmem:[#allocation12 + $0x80] sm:$0xff]
          %v1512 = vld [vmem:[#allocation12 + $0x88] sm:$0xff]
          %v1513 = vld [vmem:[#allocation12 + $0x90] sm:$0xff]
          %v1514 = vld [vmem:[#allocation12 + $0x98] sm:$0xff]
          %v1515 = vld [vmem:[#allocation12 + $0xa0] sm:$0xff]
          %v1516 = vld [vmem:[#allocation12 + $0xa8] sm:$0xff]
          %v1517 = vld [vmem:[#allocation12 + $0xb0] sm:$0xff]
          %v1518 = vld [vmem:[#allocation12 + $0xb8] sm:$0xff]
          %v1519 = vld [vmem:[#allocation12 + $0xc0] sm:$0xff]
          %v1520 = vld [vmem:[#allocation12 + $0xc8] sm:$0xff]
          %v1521 = vld [vmem:[#allocation12 + $0xd0] sm:$0xff]
          %v1522 = vld [vmem:[#allocation12 + $0xd8] sm:$0xff]
          %v1523 = vld [vmem:[#allocation12 + $0xe0] sm:$0xff]
          %v1524 = vld [vmem:[#allocation12 + $0xe8] sm:$0xff]
          %v1525 = vld [vmem:[#allocation12 + $0xf0] sm:$0xff]
          %v1526 = vld [vmem:[#allocation12 + $0xf8] sm:$0xff]
          %v1527 = vld [vmem:[#allocation12 + $0x100] sm:$0xff]
          %v1528 = vld [vmem:[#allocation12 + $0x108] sm:$0xff]
          %v1529 = vld [vmem:[#allocation12 + $0x110] sm:$0xff]
          %v1530 = vld [vmem:[#allocation12 + $0x118] sm:$0xff]
          %v1531 = vld [vmem:[#allocation12 + $0x120] sm:$0xff]
          %v1532 = vld [vmem:[#allocation12 + $0x128] sm:$0xff]
          %v1533 = vld [vmem:[#allocation12 + $0x130] sm:$0xff]
          %v1534 = vld [vmem:[#allocation12 + $0x138] sm:$0xff]
          %v1535 = vld [vmem:[#allocation12 + $0x140] sm:$0xff]
          %v1536 = vld [vmem:[#allocation12 + $0x148] sm:$0xff]
          %v1537 = vld [vmem:[#allocation12 + $0x150] sm:$0xff]
          %v1538 = vld [vmem:[#allocation12 + $0x158] sm:$0xff]
          %v1539 = vld [vmem:[#allocation12 + $0x160] sm:$0xff]
          %v1540 = vld [vmem:[#allocation12 + $0x168] sm:$0xff]
          %v1541 = vld [vmem:[#allocation12 + $0x170] sm:$0xff]
          %v1542 = vld [vmem:[#allocation12 + $0x178] sm:$0xff]
          %v1543 = vld [vmem:[#allocation12 + $0x180] sm:$0xff]
          %v1544 = vld [vmem:[#allocation12 + $0x188] sm:$0xff]
          %v1545 = vld [vmem:[#allocation12 + $0x190] sm:$0xff]
          %v1546 = vld [vmem:[#allocation12 + $0x198] sm:$0xff]
          %v1547 = vld [vmem:[#allocation12 + $0x1a0] sm:$0xff]
          %v1548 = vld [vmem:[#allocation12 + $0x1a8] sm:$0xff]
          %v1549 = vld [vmem:[#allocation12 + $0x1b0] sm:$0xff]
          %v1550 = vld [vmem:[#allocation12 + $0x1b8] sm:$0xff]
          %v1551 = vld [vmem:[#allocation12 + $0x1c0] sm:$0xff]
          %v1552 = vld [vmem:[#allocation12 + $0x1c8] sm:$0xff]
          %v1553 = vld [vmem:[#allocation12 + $0x1d0] sm:$0xff]
          %v1554 = vld [vmem:[#allocation12 + $0x1d8] sm:$0xff]
          %v1555 = vld [vmem:[#allocation12 + $0x1e0] sm:$0xff]
          %v1556 = vld [vmem:[#allocation12 + $0x1e8] sm:$0xff]
          %v1557 = vld [vmem:[#allocation12 + $0x1f0] sm:$0xff]
          %v1558 = vld [vmem:[#allocation12 + $0x1f8] sm:$0xff]
          %v1559 = vld [vmem:[#allocation14] sm:$0xff]
          %v1561 = vlaneseq
          %v1562 = vshrl.u32 %v1561, 7
          %v1563 = vsub.s32 0, %v1562
          %v1564 = vrot.slane %v1559, %v1563
          %v1565 = vlaneseq
          %v1566 = vshrl.u32 %v1565, 7
          %v1567 = vsub.s32 1, %v1566
          %v1568 = vrot.slane %v1559, %v1567
          %v1569 = vlaneseq
          %v1570 = vshrl.u32 %v1569, 7
          %v1571 = vsub.s32 2, %v1570
          %v1572 = vrot.slane %v1559, %v1571
          %v1573 = vlaneseq
          %v1574 = vshrl.u32 %v1573, 7
          %v1575 = vsub.s32 3, %v1574
          %v1576 = vrot.slane %v1559, %v1575
          %v1577 = vlaneseq
          %v1578 = vshrl.u32 %v1577, 7
          %v1579 = vsub.s32 4, %v1578
          %v1580 = vrot.slane %v1559, %v1579
          %v1581 = vlaneseq
          %v1582 = vshrl.u32 %v1581, 7
          %v1583 = vsub.s32 5, %v1582
          %v1584 = vrot.slane %v1559, %v1583
          %v1585 = vlaneseq
          %v1586 = vshrl.u32 %v1585, 7
          %v1587 = vsub.s32 6, %v1586
          %v1588 = vrot.slane %v1559, %v1587
          %v1589 = vlaneseq
          %v1590 = vshrl.u32 %v1589, 7
          %v1591 = vsub.s32 7, %v1590
          %v1592 = vrot.slane %v1559, %v1591
          %v1665 = vunpack.c.l.b16 %v1495
          %v1666 = vunpack.c.h.b16 %v1495
          %v1667 = vunpack.c.l.b16 %v1496
          %v1668 = vunpack.c.h.b16 %v1496
          %v1669 = vunpack.c.l.b16 %v1497
          %v1670 = vunpack.c.h.b16 %v1497
          %v1671 = vunpack.c.l.b16 %v1498
          %v1672 = vunpack.c.h.b16 %v1498
          %v1673 = vunpack.c.l.b16 %v1499
          %v1674 = vunpack.c.h.b16 %v1499
          %v1675 = vunpack.c.l.b16 %v1500
          %v1676 = vunpack.c.h.b16 %v1500
          %v1677 = vunpack.c.l.b16 %v1501
          %v1678 = vunpack.c.h.b16 %v1501
          %v1679 = vunpack.c.l.b16 %v1502
          %v1680 = vunpack.c.h.b16 %v1502
          %v1681 = vunpack.c.l.b16 %v1503
          %v1682 = vunpack.c.h.b16 %v1503
          %v1683 = vunpack.c.l.b16 %v1504
          %v1684 = vunpack.c.h.b16 %v1504
          %v1685 = vunpack.c.l.b16 %v1505
          %v1686 = vunpack.c.h.b16 %v1505
          %v1687 = vunpack.c.l.b16 %v1506
          %v1688 = vunpack.c.h.b16 %v1506
          %v1689 = vunpack.c.l.b16 %v1507
          %v1690 = vunpack.c.h.b16 %v1507
          %v1691 = vunpack.c.l.b16 %v1508
          %v1692 = vunpack.c.h.b16 %v1508
          %v1693 = vunpack.c.l.b16 %v1509
          %v1694 = vunpack.c.h.b16 %v1509
          %v1695 = vunpack.c.l.b16 %v1510
          %v1696 = vunpack.c.h.b16 %v1510
          %v1697 = vunpack.c.l.b16 %v1511
          %v1698 = vunpack.c.h.b16 %v1511
          %v1699 = vunpack.c.l.b16 %v1512
          %v1700 = vunpack.c.h.b16 %v1512
          %v1701 = vunpack.c.l.b16 %v1513
          %v1702 = vunpack.c.h.b16 %v1513
          %v1703 = vunpack.c.l.b16 %v1514
          %v1704 = vunpack.c.h.b16 %v1514
          %v1705 = vunpack.c.l.b16 %v1515
          %v1706 = vunpack.c.h.b16 %v1515
          %v1707 = vunpack.c.l.b16 %v1516
          %v1708 = vunpack.c.h.b16 %v1516
          %v1709 = vunpack.c.l.b16 %v1517
          %v1710 = vunpack.c.h.b16 %v1517
          %v1711 = vunpack.c.l.b16 %v1518
          %v1712 = vunpack.c.h.b16 %v1518
          %v1713 = vunpack.c.l.b16 %v1519
          %v1714 = vunpack.c.h.b16 %v1519
          %v1715 = vunpack.c.l.b16 %v1520
          %v1716 = vunpack.c.h.b16 %v1520
          %v1717 = vunpack.c.l.b16 %v1521
          %v1718 = vunpack.c.h.b16 %v1521
          %v1719 = vunpack.c.l.b16 %v1522
          %v1720 = vunpack.c.h.b16 %v1522
          %v1721 = vunpack.c.l.b16 %v1523
          %v1722 = vunpack.c.h.b16 %v1523
          %v1723 = vunpack.c.l.b16 %v1524
          %v1724 = vunpack.c.h.b16 %v1524
          %v1725 = vunpack.c.l.b16 %v1525
          %v1726 = vunpack.c.h.b16 %v1525
          %v1727 = vunpack.c.l.b16 %v1526
          %v1728 = vunpack.c.h.b16 %v1526
          %v1729 = vunpack.c.l.b16 %v1527
          %v1730 = vunpack.c.h.b16 %v1527
          %v1731 = vunpack.c.l.b16 %v1528
          %v1732 = vunpack.c.h.b16 %v1528
          %v1733 = vunpack.c.l.b16 %v1529
          %v1734 = vunpack.c.h.b16 %v1529
          %v1735 = vunpack.c.l.b16 %v1530
          %v1736 = vunpack.c.h.b16 %v1530
          %v1737 = vunpack.c.l.b16 %v1531
          %v1738 = vunpack.c.h.b16 %v1531
          %v1739 = vunpack.c.l.b16 %v1532
          %v1740 = vunpack.c.h.b16 %v1532
          %v1741 = vunpack.c.l.b16 %v1533
          %v1742 = vunpack.c.h.b16 %v1533
          %v1743 = vunpack.c.l.b16 %v1534
          %v1744 = vunpack.c.h.b16 %v1534
          %v1745 = vunpack.c.l.b16 %v1535
          %v1746 = vunpack.c.h.b16 %v1535
          %v1747 = vunpack.c.l.b16 %v1536
          %v1748 = vunpack.c.h.b16 %v1536
          %v1749 = vunpack.c.l.b16 %v1537
          %v1750 = vunpack.c.h.b16 %v1537
          %v1751 = vunpack.c.l.b16 %v1538
          %v1752 = vunpack.c.h.b16 %v1538
          %v1753 = vunpack.c.l.b16 %v1539
          %v1754 = vunpack.c.h.b16 %v1539
          %v1755 = vunpack.c.l.b16 %v1540
          %v1756 = vunpack.c.h.b16 %v1540
          %v1757 = vunpack.c.l.b16 %v1541
          %v1758 = vunpack.c.h.b16 %v1541
          %v1759 = vunpack.c.l.b16 %v1542
          %v1760 = vunpack.c.h.b16 %v1542
          %v1761 = vunpack.c.l.b16 %v1543
          %v1762 = vunpack.c.h.b16 %v1543
          %v1763 = vunpack.c.l.b16 %v1544
          %v1764 = vunpack.c.h.b16 %v1544
          %v1765 = vunpack.c.l.b16 %v1545
          %v1766 = vunpack.c.h.b16 %v1545
          %v1767 = vunpack.c.l.b16 %v1546
          %v1768 = vunpack.c.h.b16 %v1546
          %v1769 = vunpack.c.l.b16 %v1547
          %v1770 = vunpack.c.h.b16 %v1547
          %v1771 = vunpack.c.l.b16 %v1548
          %v1772 = vunpack.c.h.b16 %v1548
          %v1773 = vunpack.c.l.b16 %v1549
          %v1774 = vunpack.c.h.b16 %v1549
          %v1775 = vunpack.c.l.b16 %v1550
          %v1776 = vunpack.c.h.b16 %v1550
          %v1777 = vunpack.c.l.b16 %v1551
          %v1778 = vunpack.c.h.b16 %v1551
          %v1779 = vunpack.c.l.b16 %v1552
          %v1780 = vunpack.c.h.b16 %v1552
          %v1781 = vunpack.c.l.b16 %v1553
          %v1782 = vunpack.c.h.b16 %v1553
          %v1783 = vunpack.c.l.b16 %v1554
          %v1784 = vunpack.c.h.b16 %v1554
          %v1785 = vunpack.c.l.b16 %v1555
          %v1786 = vunpack.c.h.b16 %v1555
          %v1787 = vunpack.c.l.b16 %v1556
          %v1788 = vunpack.c.h.b16 %v1556
          %v1789 = vunpack.c.l.b16 %v1557
          %v1790 = vunpack.c.h.b16 %v1557
          %v1791 = vunpack.c.l.b16 %v1558
          %v1792 = vunpack.c.h.b16 %v1558
          %v1793 = vpack.c.b16 %v1673, %v1665
          %v1794 = vpack.c.b16 %v1674, %v1666
          %v1795 = vpack.c.b16 %v1675, %v1667
          %v1796 = vpack.c.b16 %v1676, %v1668
          %v1797 = vpack.c.b16 %v1677, %v1669
          %v1798 = vpack.c.b16 %v1678, %v1670
          %v1799 = vpack.c.b16 %v1679, %v1671
          %v1800 = vpack.c.b16 %v1680, %v1672
          %v1801 = vpack.c.b16 %v1689, %v1681
          %v1802 = vpack.c.b16 %v1690, %v1682
          %v1803 = vpack.c.b16 %v1691, %v1683
          %v1804 = vpack.c.b16 %v1692, %v1684
          %v1805 = vpack.c.b16 %v1693, %v1685
          %v1806 = vpack.c.b16 %v1694, %v1686
          %v1807 = vpack.c.b16 %v1695, %v1687
          %v1808 = vpack.c.b16 %v1696, %v1688
          %v1809 = vpack.c.b16 %v1705, %v1697
          %v1810 = vpack.c.b16 %v1706, %v1698
          %v1811 = vpack.c.b16 %v1707, %v1699
          %v1812 = vpack.c.b16 %v1708, %v1700
          %v1813 = vpack.c.b16 %v1709, %v1701
          %v1814 = vpack.c.b16 %v1710, %v1702
          %v1815 = vpack.c.b16 %v1711, %v1703
          %v1816 = vpack.c.b16 %v1712, %v1704
          %v1817 = vpack.c.b16 %v1721, %v1713
          %v1818 = vpack.c.b16 %v1722, %v1714
          %v1819 = vpack.c.b16 %v1723, %v1715
          %v1820 = vpack.c.b16 %v1724, %v1716
          %v1821 = vpack.c.b16 %v1725, %v1717
          %v1822 = vpack.c.b16 %v1726, %v1718
          %v1823 = vpack.c.b16 %v1727, %v1719
          %v1824 = vpack.c.b16 %v1728, %v1720
          %v1825 = vpack.c.b16 %v1737, %v1729
          %v1826 = vpack.c.b16 %v1738, %v1730
          %v1827 = vpack.c.b16 %v1739, %v1731
          %v1828 = vpack.c.b16 %v1740, %v1732
          %v1829 = vpack.c.b16 %v1741, %v1733
          %v1830 = vpack.c.b16 %v1742, %v1734
          %v1831 = vpack.c.b16 %v1743, %v1735
          %v1832 = vpack.c.b16 %v1744, %v1736
          %v1833 = vpack.c.b16 %v1753, %v1745
          %v1834 = vpack.c.b16 %v1754, %v1746
          %v1835 = vpack.c.b16 %v1755, %v1747
          %v1836 = vpack.c.b16 %v1756, %v1748
          %v1837 = vpack.c.b16 %v1757, %v1749
          %v1838 = vpack.c.b16 %v1758, %v1750
          %v1839 = vpack.c.b16 %v1759, %v1751
          %v1840 = vpack.c.b16 %v1760, %v1752
          %v1841 = vpack.c.b16 %v1769, %v1761
          %v1842 = vpack.c.b16 %v1770, %v1762
          %v1843 = vpack.c.b16 %v1771, %v1763
          %v1844 = vpack.c.b16 %v1772, %v1764
          %v1845 = vpack.c.b16 %v1773, %v1765
          %v1846 = vpack.c.b16 %v1774, %v1766
          %v1847 = vpack.c.b16 %v1775, %v1767
          %v1848 = vpack.c.b16 %v1776, %v1768
          %v1849 = vpack.c.b16 %v1785, %v1777
          %v1850 = vpack.c.b16 %v1786, %v1778
          %v1851 = vpack.c.b16 %v1787, %v1779
          %v1852 = vpack.c.b16 %v1788, %v1780
          %v1853 = vpack.c.b16 %v1789, %v1781
          %v1854 = vpack.c.b16 %v1790, %v1782
          %v1855 = vpack.c.b16 %v1791, %v1783
          %v1856 = vpack.c.b16 %v1792, %v1784
          %1921 = vmatprep.subr.bf16.mxu0 %v1794
          %1922 = vmatpush1.bf16.msra.mxu0 %v1793
          %1923 = vmatprep.subr.bf16.mxu0 %v1802
          %1924 = vmatpush1.bf16.msra.mxu0 %v1801
          %1925 = vmatprep.subr.bf16.mxu0 %v1810
          %1926 = vmatpush1.bf16.msra.mxu0 %v1809
          %1927 = vmatprep.subr.bf16.mxu0 %v1818
          %1928 = vmatpush1.bf16.msra.mxu0 %v1817
          %1929 = vmatprep.subr.bf16.mxu0 %v1826
          %1930 = vmatpush1.bf16.msra.mxu0 %v1825
          %1931 = vmatprep.subr.bf16.mxu0 %v1834
          %1932 = vmatpush1.bf16.msra.mxu0 %v1833
          %1933 = vmatprep.subr.bf16.mxu0 %v1842
          %1934 = vmatpush1.bf16.msra.mxu0 %v1841
          %1935 = vmatprep.subr.bf16.mxu0 %v1850
          %1936 = vmatpush1.bf16.msra.mxu0 %v1849
          %1937 = vmatprep.subr.bf16.mxu0 0
          %1938 = vmatpush1.bf16.msra.mxu0 0
          %1939 = vmatprep.subr.bf16.mxu0 0
          %1940 = vmatpush1.bf16.msra.mxu0 0
          %1941 = vmatprep.subr.bf16.mxu0 0
          %1942 = vmatpush1.bf16.msra.mxu0 0
          %1943 = vmatprep.subr.bf16.mxu0 0
          %1944 = vmatpush1.bf16.msra.mxu0 0
          %1945 = vmatprep.subr.bf16.mxu0 0
          %1946 = vmatpush1.bf16.msra.mxu0 0
          %1947 = vmatprep.subr.bf16.mxu0 0
          %1948 = vmatpush1.bf16.msra.mxu0 0
          %1949 = vmatprep.subr.bf16.mxu0 0
          %1950 = vmatpush1.bf16.msra.mxu0 0
          %1951 = vmatprep.subr.bf16.mxu0 0
          %1952 = vmatpush1.bf16.msra.mxu0 0
          %1953 = vmatprep.mubr.bf16.mxu0 0
          %1954 = vmatmul.mubr.bf16.gmra.mrb[0].mxu0 %v1494
          %v1955 = vpop.f32.mrb[0].mxu0
          %v1956 = vadd.f32 %v1564, %v1955
          %v1957 = vpop.f32.mrb[0].mxu0
          %v1958 = vadd.f32 %v1568, %v1957
          %v1959 = vpop.f32.mrb[0].mxu0
          %v1960 = vpop.f32.mrb[0].mxu0
          %1961 = vdwg.mxu0
          %1962 = vmatprep.subr.bf16.mxu0 %v1796
          %1963 = vmatpush1.bf16.msra.mxu0 %v1795
          %1964 = vmatprep.subr.bf16.mxu0 %v1804
          %1965 = vmatpush1.bf16.msra.mxu0 %v1803
          %1966 = vmatprep.subr.bf16.mxu0 %v1812
          %1967 = vmatpush1.bf16.msra.mxu0 %v1811
          %1968 = vmatprep.subr.bf16.mxu0 %v1820
          %1969 = vmatpush1.bf16.msra.mxu0 %v1819
          %1970 = vmatprep.subr.bf16.mxu0 %v1828
          %1971 = vmatpush1.bf16.msra.mxu0 %v1827
          %1972 = vmatprep.subr.bf16.mxu0 %v1836
          %1973 = vmatpush1.bf16.msra.mxu0 %v1835
          %1974 = vmatprep.subr.bf16.mxu0 %v1844
          %1975 = vmatpush1.bf16.msra.mxu0 %v1843
          %1976 = vmatprep.subr.bf16.mxu0 %v1852
          %1977 = vmatpush1.bf16.msra.mxu0 %v1851
          %1978 = vmatprep.subr.bf16.mxu0 0
          %1979 = vmatpush1.bf16.msra.mxu0 0
          %1980 = vmatprep.subr.bf16.mxu0 0
          %1981 = vmatpush1.bf16.msra.mxu0 0
          %1982 = vmatprep.subr.bf16.mxu0 0
          %1983 = vmatpush1.bf16.msra.mxu0 0
          %1984 = vmatprep.subr.bf16.mxu0 0
          %1985 = vmatpush1.bf16.msra.mxu0 0
          %1986 = vmatprep.subr.bf16.mxu0 0
          %1987 = vmatpush1.bf16.msra.mxu0 0
          %1988 = vmatprep.subr.bf16.mxu0 0
          %1989 = vmatpush1.bf16.msra.mxu0 0
          %1990 = vmatprep.subr.bf16.mxu0 0
          %1991 = vmatpush1.bf16.msra.mxu0 0
          %1992 = vmatprep.subr.bf16.mxu0 0
          %1993 = vmatpush1.bf16.msra.mxu0 0
          %1994 = vmatprep.mubr.bf16.mxu0 0
          %1995 = vmatmul.mubr.bf16.gmra.mrb[0].mxu0 %v1494
          %v1996 = vpop.f32.mrb[0].mxu0
          %v1997 = vadd.f32 %v1572, %v1996
          %v1998 = vpop.f32.mrb[0].mxu0
          %v1999 = vadd.f32 %v1576, %v1998
          %v2000 = vpop.f32.mrb[0].mxu0
          %v2001 = vpop.f32.mrb[0].mxu0
          %2002 = vdwg.mxu0
          %2003 = vmatprep.subr.bf16.mxu0 %v1798
          %2004 = vmatpush1.bf16.msra.mxu0 %v1797
          %2005 = vmatprep.subr.bf16.mxu0 %v1806
          %2006 = vmatpush1.bf16.msra.mxu0 %v1805
          %2007 = vmatprep.subr.bf16.mxu0 %v1814
          %2008 = vmatpush1.bf16.msra.mxu0 %v1813
          %2009 = vmatprep.subr.bf16.mxu0 %v1822
          %2010 = vmatpush1.bf16.msra.mxu0 %v1821
          %2011 = vmatprep.subr.bf16.mxu0 %v1830
          %2012 = vmatpush1.bf16.msra.mxu0 %v1829
          %2013 = vmatprep.subr.bf16.mxu0 %v1838
          %2014 = vmatpush1.bf16.msra.mxu0 %v1837
          %2015 = vmatprep.subr.bf16.mxu0 %v1846
          %2016 = vmatpush1.bf16.msra.mxu0 %v1845
          %2017 = vmatprep.subr.bf16.mxu0 %v1854
          %2018 = vmatpush1.bf16.msra.mxu0 %v1853
          %2019 = vmatprep.subr.bf16.mxu0 0
          %2020 = vmatpush1.bf16.msra.mxu0 0
          %2021 = vmatprep.subr.bf16.mxu0 0
          %2022 = vmatpush1.bf16.msra.mxu0 0
          %2023 = vmatprep.subr.bf16.mxu0 0
          %2024 = vmatpush1.bf16.msra.mxu0 0
          %2025 = vmatprep.subr.bf16.mxu0 0
          %2026 = vmatpush1.bf16.msra.mxu0 0
          %2027 = vmatprep.subr.bf16.mxu0 0
          %2028 = vmatpush1.bf16.msra.mxu0 0
          %2029 = vmatprep.subr.bf16.mxu0 0
          %2030 = vmatpush1.bf16.msra.mxu0 0
          %2031 = vmatprep.subr.bf16.mxu0 0
          %2032 = vmatpush1.bf16.msra.mxu0 0
          %2033 = vmatprep.subr.bf16.mxu0 0
          %2034 = vmatpush1.bf16.msra.mxu0 0
          %2035 = vmatprep.mubr.bf16.mxu0 0
          %2036 = vmatmul.mubr.bf16.gmra.mrb[0].mxu0 %v1494
          %v2037 = vpop.f32.mrb[0].mxu0
          %v2038 = vadd.f32 %v1580, %v2037
          %v2039 = vpop.f32.mrb[0].mxu0
          %v2040 = vadd.f32 %v1584, %v2039
          %v2041 = vpop.f32.mrb[0].mxu0
          %v2042 = vpop.f32.mrb[0].mxu0
          %2043 = vdwg.mxu0
          %2044 = vmatprep.subr.bf16.mxu0 %v1800
          %2045 = vmatpush1.bf16.msra.mxu0 %v1799
          %2046 = vmatprep.subr.bf16.mxu0 %v1808
          %2047 = vmatpush1.bf16.msra.mxu0 %v1807
          %2048 = vmatprep.subr.bf16.mxu0 %v1816
          %2049 = vmatpush1.bf16.msra.mxu0 %v1815
          %2050 = vmatprep.subr.bf16.mxu0 %v1824
          %2051 = vmatpush1.bf16.msra.mxu0 %v1823
          %2052 = vmatprep.subr.bf16.mxu0 %v1832
          %2053 = vmatpush1.bf16.msra.mxu0 %v1831
          %2054 = vmatprep.subr.bf16.mxu0 %v1840
          %2055 = vmatpush1.bf16.msra.mxu0 %v1839
          %2056 = vmatprep.subr.bf16.mxu0 %v1848
          %2057 = vmatpush1.bf16.msra.mxu0 %v1847
          %2058 = vmatprep.subr.bf16.mxu0 %v1856
          %2059 = vmatpush1.bf16.msra.mxu0 %v1855
          %2060 = vmatprep.subr.bf16.mxu0 0
          %2061 = vmatpush1.bf16.msra.mxu0 0
          %2062 = vmatprep.subr.bf16.mxu0 0
          %2063 = vmatpush1.bf16.msra.mxu0 0
          %2064 = vmatprep.subr.bf16.mxu0 0
          %2065 = vmatpush1.bf16.msra.mxu0 0
          %2066 = vmatprep.subr.bf16.mxu0 0
          %2067 = vmatpush1.bf16.msra.mxu0 0
          %2068 = vmatprep.subr.bf16.mxu0 0
          %2069 = vmatpush1.bf16.msra.mxu0 0
          %2070 = vmatprep.subr.bf16.mxu0 0
          %2071 = vmatpush1.bf16.msra.mxu0 0
          %2072 = vmatprep.subr.bf16.mxu0 0
          %2073 = vmatpush1.bf16.msra.mxu0 0
          %2074 = vmatprep.subr.bf16.mxu0 0
          %2075 = vmatpush1.bf16.msra.mxu0 0
          %2076 = vmatprep.mubr.bf16.mxu0 0
          %2077 = vmatmul.mubr.bf16.gmra.mrb[0].mxu0 %v1494
          %v2078 = vpop.f32.mrb[0].mxu0
          %v2079 = vadd.f32 %v1588, %v2078
          %v2080 = vpop.f32.mrb[0].mxu0
          %v2081 = vadd.f32 %v1592, %v2080
          %v2082 = vpop.f32.mrb[0].mxu0
          %v2083 = vpop.f32.mrb[0].mxu0
          %2084 = vdwg.mxu0
          %v2085 = vmax.f32 %v1956, 0.0
          %v2086 = vmax.f32 %v1958, 0.0
          %v2087 = vmax.f32 %v1997, 0.0
          %v2088 = vmax.f32 %v1999, 0.0
          %v2089 = vmax.f32 %v2038, 0.0
          %v2090 = vmax.f32 %v2040, 0.0
          %v2091 = vmax.f32 %v2079, 0.0
          %v2092 = vmax.f32 %v2081, 0.0
          %2093 = vst [vmem:[#allocation17] sm:$0xff] %v1261
          %2094 = vst [vmem:[#allocation18] sm:$0xff] %v1273
          %2095 = vst [vmem:[#allocation20] sm:$0xff] %v1387
          %2096 = vst [vmem:[#allocation21] sm:$0xff] %v2085
          %2097 = vst [vmem:[#allocation21 + $0x8] sm:$0xff] %v2086
          %2098 = vst [vmem:[#allocation21 + $0x10] sm:$0xff] %v2087
          %2099 = vst [vmem:[#allocation21 + $0x18] sm:$0xff] %v2088
          %2100 = vst [vmem:[#allocation21 + $0x20] sm:$0xff] %v2089
          %2101 = vst [vmem:[#allocation21 + $0x28] sm:$0xff] %v2090
          %2102 = vst [vmem:[#allocation21 + $0x30] sm:$0xff] %v2091
          %2103 = vst [vmem:[#allocation21 + $0x38] sm:$0xff] %v2092
          %v2104 = vpack.c.bf16 %v2085, %v2085
          %v2105 = vpack.c.bf16 %v2086, %v2086
          %v2106 = vpack.c.bf16 %v2087, %v2087
          %v2107 = vpack.c.bf16 %v2088, %v2088
          %v2108 = vpack.c.bf16 %v2089, %v2089
          %v2109 = vpack.c.bf16 %v2090, %v2090
          %v2110 = vpack.c.bf16 %v2091, %v2091
          %v2111 = vpack.c.bf16 %v2092, %v2092
          %v2120 = vunpack.c.l.b16 %v2104
          %v2121 = vunpack.c.l.b16 %v2105
          %v2122 = vunpack.c.l.b16 %v2106
          %v2123 = vunpack.c.l.b16 %v2107
          %v2124 = vunpack.c.l.b16 %v2108
          %v2125 = vunpack.c.l.b16 %v2109
          %v2126 = vunpack.c.l.b16 %v2110
          %v2127 = vunpack.c.l.b16 %v2111
          %v2128 = vpack.c.b16 %v2121, %v2120
          %v2129 = vpack.c.b16 %v2123, %v2122
          %v2130 = vpack.c.b16 %v2125, %v2124
          %v2131 = vpack.c.b16 %v2127, %v2126
          %2136 = vst [vmem:[#allocation2] sm:$0xff] %v2128
          %2137 = vst [vmem:[#allocation2 + $0x8] sm:$0xff] %v2129
          %2138 = vst [vmem:[#allocation2 + $0x10] sm:$0xff] %v2130
          %2139 = vst [vmem:[#allocation2 + $0x18] sm:$0xff] %v2131
        $region88: #{tpu_custom_call.1} parent=51 // pred_fallthru
          _
        %v2140 = vld [vmem:[#allocation2] sm:$0xff]
        %v2141 = vld [vmem:[#allocation2 + $0x8] sm:$0xff]
        %v2142 = vld [vmem:[#allocation2 + $0x10] sm:$0xff]
        %v2143 = vld [vmem:[#allocation2 + $0x18] sm:$0xff]
        %v2144 = vld [vmem:[%s518] sm:$0xff]
        %v2145 = vld [vmem:[%s518 + $0x8] sm:$0xff]
        %v2146 = vld [vmem:[%s518 + $0x10] sm:$0xff]
        %v2147 = vld [vmem:[%s518 + $0x18] sm:$0xff]
        %v2148 = vld [vmem:[%s518 + $0x20] sm:$0xff]
        %v2149 = vld [vmem:[%s518 + $0x28] sm:$0xff]
        %v2150 = vld [vmem:[%s518 + $0x30] sm:$0xff]
        %v2151 = vld [vmem:[%s518 + $0x38] sm:$0xff]
        %v2152 = vld [vmem:[%s518 + $0x40] sm:$0xff]
        %v2153 = vld [vmem:[%s518 + $0x48] sm:$0xff]
        %v2154 = vld [vmem:[%s518 + $0x50] sm:$0xff]
        %v2155 = vld [vmem:[%s518 + $0x58] sm:$0xff]
        %v2156 = vld [vmem:[%s518 + $0x60] sm:$0xff]
        %v2157 = vld [vmem:[%s518 + $0x68] sm:$0xff]
        %v2158 = vld [vmem:[%s518 + $0x70] sm:$0xff]
        %v2159 = vld [vmem:[%s518 + $0x78] sm:$0xff]
        %v2160 = vld [vmem:[%s518 + $0x80] sm:$0xff]
        %v2161 = vld [vmem:[%s518 + $0x88] sm:$0xff]
        %v2162 = vld [vmem:[%s518 + $0x90] sm:$0xff]
        %v2163 = vld [vmem:[%s518 + $0x98] sm:$0xff]
        %v2164 = vld [vmem:[%s518 + $0xa0] sm:$0xff]
        %v2165 = vld [vmem:[%s518 + $0xa8] sm:$0xff]
        %v2166 = vld [vmem:[%s518 + $0xb0] sm:$0xff]
        %v2167 = vld [vmem:[%s518 + $0xb8] sm:$0xff]
        %v2168 = vld [vmem:[%s518 + $0xc0] sm:$0xff]
        %v2169 = vld [vmem:[%s518 + $0xc8] sm:$0xff]
        %v2170 = vld [vmem:[%s518 + $0xd0] sm:$0xff]
        %v2171 = vld [vmem:[%s518 + $0xd8] sm:$0xff]
        %v2172 = vld [vmem:[%s518 + $0xe0] sm:$0xff]
        %v2173 = vld [vmem:[%s518 + $0xe8] sm:$0xff]
        %v2174 = vld [vmem:[%s518 + $0xf0] sm:$0xff]
        %v2175 = vld [vmem:[%s518 + $0xf8] sm:$0xff]
        %v2176 = vld [vmem:[%s518 + $0x100] sm:$0xff]
        %v2177 = vld [vmem:[%s518 + $0x108] sm:$0xff]
        %v2178 = vld [vmem:[%s518 + $0x110] sm:$0xff]
        %v2179 = vld [vmem:[%s518 + $0x118] sm:$0xff]
        %v2180 = vld [vmem:[%s518 + $0x120] sm:$0xff]
        %v2181 = vld [vmem:[%s518 + $0x128] sm:$0xff]
        %v2182 = vld [vmem:[%s518 + $0x130] sm:$0xff]
        %v2183 = vld [vmem:[%s518 + $0x138] sm:$0xff]
        %v2184 = vld [vmem:[%s518 + $0x140] sm:$0xff]
        %v2185 = vld [vmem:[%s518 + $0x148] sm:$0xff]
        %v2186 = vld [vmem:[%s518 + $0x150] sm:$0xff]
        %v2187 = vld [vmem:[%s518 + $0x158] sm:$0xff]
        %v2188 = vld [vmem:[%s518 + $0x160] sm:$0xff]
        %v2189 = vld [vmem:[%s518 + $0x168] sm:$0xff]
        %v2190 = vld [vmem:[%s518 + $0x170] sm:$0xff]
        %v2191 = vld [vmem:[%s518 + $0x178] sm:$0xff]
        %v2192 = vld [vmem:[%s518 + $0x180] sm:$0xff]
        %v2193 = vld [vmem:[%s518 + $0x188] sm:$0xff]
        %v2194 = vld [vmem:[%s518 + $0x190] sm:$0xff]
        %v2195 = vld [vmem:[%s518 + $0x198] sm:$0xff]
        %v2196 = vld [vmem:[%s518 + $0x1a0] sm:$0xff]
        %v2197 = vld [vmem:[%s518 + $0x1a8] sm:$0xff]
        %v2198 = vld [vmem:[%s518 + $0x1b0] sm:$0xff]
        %v2199 = vld [vmem:[%s518 + $0x1b8] sm:$0xff]
        %v2200 = vld [vmem:[%s518 + $0x1c0] sm:$0xff]
        %v2201 = vld [vmem:[%s518 + $0x1c8] sm:$0xff]
        %v2202 = vld [vmem:[%s518 + $0x1d0] sm:$0xff]
        %v2203 = vld [vmem:[%s518 + $0x1d8] sm:$0xff]
        %v2204 = vld [vmem:[%s518 + $0x1e0] sm:$0xff]
        %v2205 = vld [vmem:[%s518 + $0x1e8] sm:$0xff]
        %v2206 = vld [vmem:[%s518 + $0x1f0] sm:$0xff]
        %v2207 = vld [vmem:[%s518 + $0x1f8] sm:$0xff]
        %v2208 = vld [vmem:[%s518 + $0x200] sm:$0xff]
        %v2209 = vld [vmem:[%s518 + $0x208] sm:$0xff]
        %v2210 = vld [vmem:[%s518 + $0x210] sm:$0xff]
        %v2211 = vld [vmem:[%s518 + $0x218] sm:$0xff]
        %v2212 = vld [vmem:[%s518 + $0x220] sm:$0xff]
        %v2213 = vld [vmem:[%s518 + $0x228] sm:$0xff]
        %v2214 = vld [vmem:[%s518 + $0x230] sm:$0xff]
        %v2215 = vld [vmem:[%s518 + $0x238] sm:$0xff]
        %v2216 = vld [vmem:[%s518 + $0x240] sm:$0xff]
        %v2217 = vld [vmem:[%s518 + $0x248] sm:$0xff]
        %v2218 = vld [vmem:[%s518 + $0x250] sm:$0xff]
        %v2219 = vld [vmem:[%s518 + $0x258] sm:$0xff]
        %v2220 = vld [vmem:[%s518 + $0x260] sm:$0xff]
        %v2221 = vld [vmem:[%s518 + $0x268] sm:$0xff]
        %v2222 = vld [vmem:[%s518 + $0x270] sm:$0xff]
        %v2223 = vld [vmem:[%s518 + $0x278] sm:$0xff]
        %v2224 = vld [vmem:[%s518 + $0x280] sm:$0xff]
        %v2225 = vld [vmem:[%s518 + $0x288] sm:$0xff]
        %v2226 = vld [vmem:[%s518 + $0x290] sm:$0xff]
        %v2227 = vld [vmem:[%s518 + $0x298] sm:$0xff]
        %v2228 = vld [vmem:[%s518 + $0x2a0] sm:$0xff]
        %v2229 = vld [vmem:[%s518 + $0x2a8] sm:$0xff]
        %v2230 = vld [vmem:[%s518 + $0x2b0] sm:$0xff]
        %v2231 = vld [vmem:[%s518 + $0x2b8] sm:$0xff]
        %v2232 = vld [vmem:[%s518 + $0x2c0] sm:$0xff]
        %v2233 = vld [vmem:[%s518 + $0x2c8] sm:$0xff]
        %v2234 = vld [vmem:[%s518 + $0x2d0] sm:$0xff]
        %v2235 = vld [vmem:[%s518 + $0x2d8] sm:$0xff]
        %v2236 = vld [vmem:[%s518 + $0x2e0] sm:$0xff]
        %v2237 = vld [vmem:[%s518 + $0x2e8] sm:$0xff]
        %v2238 = vld [vmem:[%s518 + $0x2f0] sm:$0xff]
        %v2239 = vld [vmem:[%s518 + $0x2f8] sm:$0xff]
        %v2240 = vld [vmem:[%s518 + $0x300] sm:$0xff]
        %v2241 = vld [vmem:[%s518 + $0x308] sm:$0xff]
        %v2242 = vld [vmem:[%s518 + $0x310] sm:$0xff]
        %v2243 = vld [vmem:[%s518 + $0x318] sm:$0xff]
        %v2244 = vld [vmem:[%s518 + $0x320] sm:$0xff]
        %v2245 = vld [vmem:[%s518 + $0x328] sm:$0xff]
        %v2246 = vld [vmem:[%s518 + $0x330] sm:$0xff]
        %v2247 = vld [vmem:[%s518 + $0x338] sm:$0xff]
        %v2248 = vld [vmem:[%s518 + $0x340] sm:$0xff]
        %v2249 = vld [vmem:[%s518 + $0x348] sm:$0xff]
        %v2250 = vld [vmem:[%s518 + $0x350] sm:$0xff]
        %v2251 = vld [vmem:[%s518 + $0x358] sm:$0xff]
        %v2252 = vld [vmem:[%s518 + $0x360] sm:$0xff]
        %v2253 = vld [vmem:[%s518 + $0x368] sm:$0xff]
        %v2254 = vld [vmem:[%s518 + $0x370] sm:$0xff]
        %v2255 = vld [vmem:[%s518 + $0x378] sm:$0xff]
        %v2256 = vld [vmem:[%s518 + $0x380] sm:$0xff]
        %v2257 = vld [vmem:[%s518 + $0x388] sm:$0xff]
        %v2258 = vld [vmem:[%s518 + $0x390] sm:$0xff]
        %v2259 = vld [vmem:[%s518 + $0x398] sm:$0xff]
        %v2260 = vld [vmem:[%s518 + $0x3a0] sm:$0xff]
        %v2261 = vld [vmem:[%s518 + $0x3a8] sm:$0xff]
        %v2262 = vld [vmem:[%s518 + $0x3b0] sm:$0xff]
        %v2263 = vld [vmem:[%s518 + $0x3b8] sm:$0xff]
        %v2264 = vld [vmem:[%s518 + $0x3c0] sm:$0xff]
        %v2265 = vld [vmem:[%s518 + $0x3c8] sm:$0xff]
        %v2266 = vld [vmem:[%s518 + $0x3d0] sm:$0xff]
        %v2267 = vld [vmem:[%s518 + $0x3d8] sm:$0xff]
        %v2268 = vld [vmem:[%s518 + $0x3e0] sm:$0xff]
        %v2269 = vld [vmem:[%s518 + $0x3e8] sm:$0xff]
        %v2270 = vld [vmem:[%s518 + $0x3f0] sm:$0xff]
        %v2271 = vld [vmem:[%s518 + $0x3f8] sm:$0xff]
        %v2276 = vunpack.c.l.b16 %v2140
        %v2277 = vunpack.c.h.b16 %v2140
        %v2278 = vunpack.c.l.b16 %v2141
        %v2279 = vunpack.c.h.b16 %v2141
        %v2280 = vunpack.c.l.b16 %v2142
        %v2281 = vunpack.c.h.b16 %v2142
        %v2282 = vunpack.c.l.b16 %v2143
        %v2283 = vunpack.c.h.b16 %v2143
        %v2284 = vpack.c.b16 %v2276, %v2276
        %v2285 = vpack.c.b16 %v2277, %v2277
        %v2286 = vpack.c.b16 %v2278, %v2278
        %v2287 = vpack.c.b16 %v2279, %v2279
        %v2288 = vpack.c.b16 %v2280, %v2280
        %v2289 = vpack.c.b16 %v2281, %v2281
        %v2290 = vpack.c.b16 %v2282, %v2282
        %v2291 = vpack.c.b16 %v2283, %v2283
        %v2428 = vunpack.c.l.b16 %v2144
        %v2429 = vunpack.c.h.b16 %v2144
        %v2430 = vunpack.c.l.b16 %v2145
        %v2431 = vunpack.c.h.b16 %v2145
        %v2432 = vunpack.c.l.b16 %v2146
        %v2433 = vunpack.c.h.b16 %v2146
        %v2434 = vunpack.c.l.b16 %v2147
        %v2435 = vunpack.c.h.b16 %v2147
        %v2436 = vunpack.c.l.b16 %v2148
        %v2437 = vunpack.c.h.b16 %v2148
        %v2438 = vunpack.c.l.b16 %v2149
        %v2439 = vunpack.c.h.b16 %v2149
        %v2440 = vunpack.c.l.b16 %v2150
        %v2441 = vunpack.c.h.b16 %v2150
        %v2442 = vunpack.c.l.b16 %v2151
        %v2443 = vunpack.c.h.b16 %v2151
        %v2444 = vunpack.c.l.b16 %v2152
        %v2445 = vunpack.c.h.b16 %v2152
        %v2446 = vunpack.c.l.b16 %v2153
        %v2447 = vunpack.c.h.b16 %v2153
        %v2448 = vunpack.c.l.b16 %v2154
        %v2449 = vunpack.c.h.b16 %v2154
        %v2450 = vunpack.c.l.b16 %v2155
        %v2451 = vunpack.c.h.b16 %v2155
        %v2452 = vunpack.c.l.b16 %v2156
        %v2453 = vunpack.c.h.b16 %v2156
        %v2454 = vunpack.c.l.b16 %v2157
        %v2455 = vunpack.c.h.b16 %v2157
        %v2456 = vunpack.c.l.b16 %v2158
        %v2457 = vunpack.c.h.b16 %v2158
        %v2458 = vunpack.c.l.b16 %v2159
        %v2459 = vunpack.c.h.b16 %v2159
        %v2460 = vunpack.c.l.b16 %v2160
        %v2461 = vunpack.c.h.b16 %v2160
        %v2462 = vunpack.c.l.b16 %v2161
        %v2463 = vunpack.c.h.b16 %v2161
        %v2464 = vunpack.c.l.b16 %v2162
        %v2465 = vunpack.c.h.b16 %v2162
        %v2466 = vunpack.c.l.b16 %v2163
        %v2467 = vunpack.c.h.b16 %v2163
        %v2468 = vunpack.c.l.b16 %v2164
        %v2469 = vunpack.c.h.b16 %v2164
        %v2470 = vunpack.c.l.b16 %v2165
        %v2471 = vunpack.c.h.b16 %v2165
        %v2472 = vunpack.c.l.b16 %v2166
        %v2473 = vunpack.c.h.b16 %v2166
        %v2474 = vunpack.c.l.b16 %v2167
        %v2475 = vunpack.c.h.b16 %v2167
        %v2476 = vunpack.c.l.b16 %v2168
        %v2477 = vunpack.c.h.b16 %v2168
        %v2478 = vunpack.c.l.b16 %v2169
        %v2479 = vunpack.c.h.b16 %v2169
        %v2480 = vunpack.c.l.b16 %v2170
        %v2481 = vunpack.c.h.b16 %v2170
        %v2482 = vunpack.c.l.b16 %v2171
        %v2483 = vunpack.c.h.b16 %v2171
        %v2484 = vunpack.c.l.b16 %v2172
        %v2485 = vunpack.c.h.b16 %v2172
        %v2486 = vunpack.c.l.b16 %v2173
        %v2487 = vunpack.c.h.b16 %v2173
        %v2488 = vunpack.c.l.b16 %v2174
        %v2489 = vunpack.c.h.b16 %v2174
        %v2490 = vunpack.c.l.b16 %v2175
        %v2491 = vunpack.c.h.b16 %v2175
        %v2492 = vunpack.c.l.b16 %v2176
        %v2493 = vunpack.c.h.b16 %v2176
        %v2494 = vunpack.c.l.b16 %v2177
        %v2495 = vunpack.c.h.b16 %v2177
        %v2496 = vunpack.c.l.b16 %v2178
        %v2497 = vunpack.c.h.b16 %v2178
        %v2498 = vunpack.c.l.b16 %v2179
        %v2499 = vunpack.c.h.b16 %v2179
        %v2500 = vunpack.c.l.b16 %v2180
        %v2501 = vunpack.c.h.b16 %v2180
        %v2502 = vunpack.c.l.b16 %v2181
        %v2503 = vunpack.c.h.b16 %v2181
        %v2504 = vunpack.c.l.b16 %v2182
        %v2505 = vunpack.c.h.b16 %v2182
        %v2506 = vunpack.c.l.b16 %v2183
        %v2507 = vunpack.c.h.b16 %v2183
        %v2508 = vunpack.c.l.b16 %v2184
        %v2509 = vunpack.c.h.b16 %v2184
        %v2510 = vunpack.c.l.b16 %v2185
        %v2511 = vunpack.c.h.b16 %v2185
        %v2512 = vunpack.c.l.b16 %v2186
        %v2513 = vunpack.c.h.b16 %v2186
        %v2514 = vunpack.c.l.b16 %v2187
        %v2515 = vunpack.c.h.b16 %v2187
        %v2516 = vunpack.c.l.b16 %v2188
        %v2517 = vunpack.c.h.b16 %v2188
        %v2518 = vunpack.c.l.b16 %v2189
        %v2519 = vunpack.c.h.b16 %v2189
        %v2520 = vunpack.c.l.b16 %v2190
        %v2521 = vunpack.c.h.b16 %v2190
        %v2522 = vunpack.c.l.b16 %v2191
        %v2523 = vunpack.c.h.b16 %v2191
        %v2524 = vunpack.c.l.b16 %v2192
        %v2525 = vunpack.c.h.b16 %v2192
        %v2526 = vunpack.c.l.b16 %v2193
        %v2527 = vunpack.c.h.b16 %v2193
        %v2528 = vunpack.c.l.b16 %v2194
        %v2529 = vunpack.c.h.b16 %v2194
        %v2530 = vunpack.c.l.b16 %v2195
        %v2531 = vunpack.c.h.b16 %v2195
        %v2532 = vunpack.c.l.b16 %v2196
        %v2533 = vunpack.c.h.b16 %v2196
        %v2534 = vunpack.c.l.b16 %v2197
        %v2535 = vunpack.c.h.b16 %v2197
        %v2536 = vunpack.c.l.b16 %v2198
        %v2537 = vunpack.c.h.b16 %v2198
        %v2538 = vunpack.c.l.b16 %v2199
        %v2539 = vunpack.c.h.b16 %v2199
        %v2540 = vunpack.c.l.b16 %v2200
        %v2541 = vunpack.c.h.b16 %v2200
        %v2542 = vunpack.c.l.b16 %v2201
        %v2543 = vunpack.c.h.b16 %v2201
        %v2544 = vunpack.c.l.b16 %v2202
        %v2545 = vunpack.c.h.b16 %v2202
        %v2546 = vunpack.c.l.b16 %v2203
        %v2547 = vunpack.c.h.b16 %v2203
        %v2548 = vunpack.c.l.b16 %v2204
        %v2549 = vunpack.c.h.b16 %v2204
        %v2550 = vunpack.c.l.b16 %v2205
        %v2551 = vunpack.c.h.b16 %v2205
        %v2552 = vunpack.c.l.b16 %v2206
        %v2553 = vunpack.c.h.b16 %v2206
        %v2554 = vunpack.c.l.b16 %v2207
        %v2555 = vunpack.c.h.b16 %v2207
        %v2556 = vunpack.c.l.b16 %v2208
        %v2557 = vunpack.c.h.b16 %v2208
        %v2558 = vunpack.c.l.b16 %v2209
        %v2559 = vunpack.c.h.b16 %v2209
        %v2560 = vunpack.c.l.b16 %v2210
        %v2561 = vunpack.c.h.b16 %v2210
        %v2562 = vunpack.c.l.b16 %v2211
        %v2563 = vunpack.c.h.b16 %v2211
        %v2564 = vunpack.c.l.b16 %v2212
        %v2565 = vunpack.c.h.b16 %v2212
        %v2566 = vunpack.c.l.b16 %v2213
        %v2567 = vunpack.c.h.b16 %v2213
        %v2568 = vunpack.c.l.b16 %v2214
        %v2569 = vunpack.c.h.b16 %v2214
        %v2570 = vunpack.c.l.b16 %v2215
        %v2571 = vunpack.c.h.b16 %v2215
        %v2572 = vunpack.c.l.b16 %v2216
        %v2573 = vunpack.c.h.b16 %v2216
        %v2574 = vunpack.c.l.b16 %v2217
        %v2575 = vunpack.c.h.b16 %v2217
        %v2576 = vunpack.c.l.b16 %v2218
        %v2577 = vunpack.c.h.b16 %v2218
        %v2578 = vunpack.c.l.b16 %v2219
        %v2579 = vunpack.c.h.b16 %v2219
        %v2580 = vunpack.c.l.b16 %v2220
        %v2581 = vunpack.c.h.b16 %v2220
        %v2582 = vunpack.c.l.b16 %v2221
        %v2583 = vunpack.c.h.b16 %v2221
        %v2584 = vunpack.c.l.b16 %v2222
        %v2585 = vunpack.c.h.b16 %v2222
        %v2586 = vunpack.c.l.b16 %v2223
        %v2587 = vunpack.c.h.b16 %v2223
        %v2588 = vunpack.c.l.b16 %v2224
        %v2589 = vunpack.c.h.b16 %v2224
        %v2590 = vunpack.c.l.b16 %v2225
        %v2591 = vunpack.c.h.b16 %v2225
        %v2592 = vunpack.c.l.b16 %v2226
        %v2593 = vunpack.c.h.b16 %v2226
        %v2594 = vunpack.c.l.b16 %v2227
        %v2595 = vunpack.c.h.b16 %v2227
        %v2596 = vunpack.c.l.b16 %v2228
        %v2597 = vunpack.c.h.b16 %v2228
        %v2598 = vunpack.c.l.b16 %v2229
        %v2599 = vunpack.c.h.b16 %v2229
        %v2600 = vunpack.c.l.b16 %v2230
        %v2601 = vunpack.c.h.b16 %v2230
        %v2602 = vunpack.c.l.b16 %v2231
        %v2603 = vunpack.c.h.b16 %v2231
        %v2604 = vunpack.c.l.b16 %v2232
        %v2605 = vunpack.c.h.b16 %v2232
        %v2606 = vunpack.c.l.b16 %v2233
        %v2607 = vunpack.c.h.b16 %v2233
        %v2608 = vunpack.c.l.b16 %v2234
        %v2609 = vunpack.c.h.b16 %v2234
        %v2610 = vunpack.c.l.b16 %v2235
        %v2611 = vunpack.c.h.b16 %v2235
        %v2612 = vunpack.c.l.b16 %v2236
        %v2613 = vunpack.c.h.b16 %v2236
        %v2614 = vunpack.c.l.b16 %v2237
        %v2615 = vunpack.c.h.b16 %v2237
        %v2616 = vunpack.c.l.b16 %v2238
        %v2617 = vunpack.c.h.b16 %v2238
        %v2618 = vunpack.c.l.b16 %v2239
        %v2619 = vunpack.c.h.b16 %v2239
        %v2620 = vunpack.c.l.b16 %v2240
        %v2621 = vunpack.c.h.b16 %v2240
        %v2622 = vunpack.c.l.b16 %v2241
        %v2623 = vunpack.c.h.b16 %v2241
        %v2624 = vunpack.c.l.b16 %v2242
        %v2625 = vunpack.c.h.b16 %v2242
        %v2626 = vunpack.c.l.b16 %v2243
        %v2627 = vunpack.c.h.b16 %v2243
        %v2628 = vunpack.c.l.b16 %v2244
        %v2629 = vunpack.c.h.b16 %v2244
        %v2630 = vunpack.c.l.b16 %v2245
        %v2631 = vunpack.c.h.b16 %v2245
        %v2632 = vunpack.c.l.b16 %v2246
        %v2633 = vunpack.c.h.b16 %v2246
        %v2634 = vunpack.c.l.b16 %v2247
        %v2635 = vunpack.c.h.b16 %v2247
        %v2636 = vunpack.c.l.b16 %v2248
        %v2637 = vunpack.c.h.b16 %v2248
        %v2638 = vunpack.c.l.b16 %v2249
        %v2639 = vunpack.c.h.b16 %v2249
        %v2640 = vunpack.c.l.b16 %v2250
        %v2641 = vunpack.c.h.b16 %v2250
        %v2642 = vunpack.c.l.b16 %v2251
        %v2643 = vunpack.c.h.b16 %v2251
        %v2644 = vunpack.c.l.b16 %v2252
        %v2645 = vunpack.c.h.b16 %v2252
        %v2646 = vunpack.c.l.b16 %v2253
        %v2647 = vunpack.c.h.b16 %v2253
        %v2648 = vunpack.c.l.b16 %v2254
        %v2649 = vunpack.c.h.b16 %v2254
        %v2650 = vunpack.c.l.b16 %v2255
        %v2651 = vunpack.c.h.b16 %v2255
        %v2652 = vunpack.c.l.b16 %v2256
        %v2653 = vunpack.c.h.b16 %v2256
        %v2654 = vunpack.c.l.b16 %v2257
        %v2655 = vunpack.c.h.b16 %v2257
        %v2656 = vunpack.c.l.b16 %v2258
        %v2657 = vunpack.c.h.b16 %v2258
        %v2658 = vunpack.c.l.b16 %v2259
        %v2659 = vunpack.c.h.b16 %v2259
        %v2660 = vunpack.c.l.b16 %v2260
        %v2661 = vunpack.c.h.b16 %v2260
        %v2662 = vunpack.c.l.b16 %v2261
        %v2663 = vunpack.c.h.b16 %v2261
        %v2664 = vunpack.c.l.b16 %v2262
        %v2665 = vunpack.c.h.b16 %v2262
        %v2666 = vunpack.c.l.b16 %v2263
        %v2667 = vunpack.c.h.b16 %v2263
        %v2668 = vunpack.c.l.b16 %v2264
        %v2669 = vunpack.c.h.b16 %v2264
        %v2670 = vunpack.c.l.b16 %v2265
        %v2671 = vunpack.c.h.b16 %v2265
        %v2672 = vunpack.c.l.b16 %v2266
        %v2673 = vunpack.c.h.b16 %v2266
        %v2674 = vunpack.c.l.b16 %v2267
        %v2675 = vunpack.c.h.b16 %v2267
        %v2676 = vunpack.c.l.b16 %v2268
        %v2677 = vunpack.c.h.b16 %v2268
        %v2678 = vunpack.c.l.b16 %v2269
        %v2679 = vunpack.c.h.b16 %v2269
        %v2680 = vunpack.c.l.b16 %v2270
        %v2681 = vunpack.c.h.b16 %v2270
        %v2682 = vunpack.c.l.b16 %v2271
        %v2683 = vunpack.c.h.b16 %v2271
        %v2684 = vpack.c.b16 %v2430, %v2428
        %v2685 = vpack.c.b16 %v2431, %v2429
        %v2686 = vpack.c.b16 %v2434, %v2432
        %v2687 = vpack.c.b16 %v2435, %v2433
        %v2688 = vpack.c.b16 %v2438, %v2436
        %v2689 = vpack.c.b16 %v2439, %v2437
        %v2690 = vpack.c.b16 %v2442, %v2440
        %v2691 = vpack.c.b16 %v2443, %v2441
        %v2692 = vpack.c.b16 %v2446, %v2444
        %v2693 = vpack.c.b16 %v2447, %v2445
        %v2694 = vpack.c.b16 %v2450, %v2448
        %v2695 = vpack.c.b16 %v2451, %v2449
        %v2696 = vpack.c.b16 %v2454, %v2452
        %v2697 = vpack.c.b16 %v2455, %v2453
        %v2698 = vpack.c.b16 %v2458, %v2456
        %v2699 = vpack.c.b16 %v2459, %v2457
        %v2700 = vpack.c.b16 %v2462, %v2460
        %v2701 = vpack.c.b16 %v2463, %v2461
        %v2702 = vpack.c.b16 %v2466, %v2464
        %v2703 = vpack.c.b16 %v2467, %v2465
        %v2704 = vpack.c.b16 %v2470, %v2468
        %v2705 = vpack.c.b16 %v2471, %v2469
        %v2706 = vpack.c.b16 %v2474, %v2472
        %v2707 = vpack.c.b16 %v2475, %v2473
        %v2708 = vpack.c.b16 %v2478, %v2476
        %v2709 = vpack.c.b16 %v2479, %v2477
        %v2710 = vpack.c.b16 %v2482, %v2480
        %v2711 = vpack.c.b16 %v2483, %v2481
        %v2712 = vpack.c.b16 %v2486, %v2484
        %v2713 = vpack.c.b16 %v2487, %v2485
        %v2714 = vpack.c.b16 %v2490, %v2488
        %v2715 = vpack.c.b16 %v2491, %v2489
        %v2716 = vpack.c.b16 %v2494, %v2492
        %v2717 = vpack.c.b16 %v2495, %v2493
        %v2718 = vpack.c.b16 %v2498, %v2496
        %v2719 = vpack.c.b16 %v2499, %v2497
        %v2720 = vpack.c.b16 %v2502, %v2500
        %v2721 = vpack.c.b16 %v2503, %v2501
        %v2722 = vpack.c.b16 %v2506, %v2504
        %v2723 = vpack.c.b16 %v2507, %v2505
        %v2724 = vpack.c.b16 %v2510, %v2508
        %v2725 = vpack.c.b16 %v2511, %v2509
        %v2726 = vpack.c.b16 %v2514, %v2512
        %v2727 = vpack.c.b16 %v2515, %v2513
        %v2728 = vpack.c.b16 %v2518, %v2516
        %v2729 = vpack.c.b16 %v2519, %v2517
        %v2730 = vpack.c.b16 %v2522, %v2520
        %v2731 = vpack.c.b16 %v2523, %v2521
        %v2732 = vpack.c.b16 %v2526, %v2524
        %v2733 = vpack.c.b16 %v2527, %v2525
        %v2734 = vpack.c.b16 %v2530, %v2528
        %v2735 = vpack.c.b16 %v2531, %v2529
        %v2736 = vpack.c.b16 %v2534, %v2532
        %v2737 = vpack.c.b16 %v2535, %v2533
        %v2738 = vpack.c.b16 %v2538, %v2536
        %v2739 = vpack.c.b16 %v2539, %v2537
        %v2740 = vpack.c.b16 %v2542, %v2540
        %v2741 = vpack.c.b16 %v2543, %v2541
        %v2742 = vpack.c.b16 %v2546, %v2544
        %v2743 = vpack.c.b16 %v2547, %v2545
        %v2744 = vpack.c.b16 %v2550, %v2548
        %v2745 = vpack.c.b16 %v2551, %v2549
        %v2746 = vpack.c.b16 %v2554, %v2552
        %v2747 = vpack.c.b16 %v2555, %v2553
        %v2748 = vpack.c.b16 %v2558, %v2556
        %v2749 = vpack.c.b16 %v2559, %v2557
        %v2750 = vpack.c.b16 %v2562, %v2560
        %v2751 = vpack.c.b16 %v2563, %v2561
        %v2752 = vpack.c.b16 %v2566, %v2564
        %v2753 = vpack.c.b16 %v2567, %v2565
        %v2754 = vpack.c.b16 %v2570, %v2568
        %v2755 = vpack.c.b16 %v2571, %v2569
        %v2756 = vpack.c.b16 %v2574, %v2572
        %v2757 = vpack.c.b16 %v2575, %v2573
        %v2758 = vpack.c.b16 %v2578, %v2576
        %v2759 = vpack.c.b16 %v2579, %v2577
        %v2760 = vpack.c.b16 %v2582, %v2580
        %v2761 = vpack.c.b16 %v2583, %v2581
        %v2762 = vpack.c.b16 %v2586, %v2584
        %v2763 = vpack.c.b16 %v2587, %v2585
        %v2764 = vpack.c.b16 %v2590, %v2588
        %v2765 = vpack.c.b16 %v2591, %v2589
        %v2766 = vpack.c.b16 %v2594, %v2592
        %v2767 = vpack.c.b16 %v2595, %v2593
        %v2768 = vpack.c.b16 %v2598, %v2596
        %v2769 = vpack.c.b16 %v2599, %v2597
        %v2770 = vpack.c.b16 %v2602, %v2600
        %v2771 = vpack.c.b16 %v2603, %v2601
        %v2772 = vpack.c.b16 %v2606, %v2604
        %v2773 = vpack.c.b16 %v2607, %v2605
        %v2774 = vpack.c.b16 %v2610, %v2608
        %v2775 = vpack.c.b16 %v2611, %v2609
        %v2776 = vpack.c.b16 %v2614, %v2612
        %v2777 = vpack.c.b16 %v2615, %v2613
        %v2778 = vpack.c.b16 %v2618, %v2616
        %v2779 = vpack.c.b16 %v2619, %v2617
        %v2780 = vpack.c.b16 %v2622, %v2620
        %v2781 = vpack.c.b16 %v2623, %v2621
        %v2782 = vpack.c.b16 %v2626, %v2624
        %v2783 = vpack.c.b16 %v2627, %v2625
        %v2784 = vpack.c.b16 %v2630, %v2628
        %v2785 = vpack.c.b16 %v2631, %v2629
        %v2786 = vpack.c.b16 %v2634, %v2632
        %v2787 = vpack.c.b16 %v2635, %v2633
        %v2788 = vpack.c.b16 %v2638, %v2636
        %v2789 = vpack.c.b16 %v2639, %v2637
        %v2790 = vpack.c.b16 %v2642, %v2640
        %v2791 = vpack.c.b16 %v2643, %v2641
        %v2792 = vpack.c.b16 %v2646, %v2644
        %v2793 = vpack.c.b16 %v2647, %v2645
        %v2794 = vpack.c.b16 %v2650, %v2648
        %v2795 = vpack.c.b16 %v2651, %v2649
        %v2796 = vpack.c.b16 %v2654, %v2652
        %v2797 = vpack.c.b16 %v2655, %v2653
        %v2798 = vpack.c.b16 %v2658, %v2656
        %v2799 = vpack.c.b16 %v2659, %v2657
        %v2800 = vpack.c.b16 %v2662, %v2660
        %v2801 = vpack.c.b16 %v2663, %v2661
        %v2802 = vpack.c.b16 %v2666, %v2664
        %v2803 = vpack.c.b16 %v2667, %v2665
        %v2804 = vpack.c.b16 %v2670, %v2668
        %v2805 = vpack.c.b16 %v2671, %v2669
        %v2806 = vpack.c.b16 %v2674, %v2672
        %v2807 = vpack.c.b16 %v2675, %v2673
        %v2808 = vpack.c.b16 %v2678, %v2676
        %v2809 = vpack.c.b16 %v2679, %v2677
        %v2810 = vpack.c.b16 %v2682, %v2680
        %v2811 = vpack.c.b16 %v2683, %v2681
        %2940 = vmatprep.subr.bf16.mxu0 %v2685
        %2941 = vmatpush1.bf16.msra.mxu0 %v2684
        %2942 = vmatprep.subr.bf16.mxu0 %v2687
        %2943 = vmatpush1.bf16.msra.mxu0 %v2686
        %2944 = vmatprep.subr.bf16.mxu0 %v2689
        %2945 = vmatpush1.bf16.msra.mxu0 %v2688
        %2946 = vmatprep.subr.bf16.mxu0 %v2691
        %2947 = vmatpush1.bf16.msra.mxu0 %v2690
        %2948 = vmatprep.subr.bf16.mxu0 %v2693
        %2949 = vmatpush1.bf16.msra.mxu0 %v2692
        %2950 = vmatprep.subr.bf16.mxu0 %v2695
        %2951 = vmatpush1.bf16.msra.mxu0 %v2694
        %2952 = vmatprep.subr.bf16.mxu0 %v2697
        %2953 = vmatpush1.bf16.msra.mxu0 %v2696
        %2954 = vmatprep.subr.bf16.mxu0 %v2699
        %2955 = vmatpush1.bf16.msra.mxu0 %v2698
        %2956 = vmatprep.subr.bf16.mxu0 %v2701
        %2957 = vmatpush1.bf16.msra.mxu0 %v2700
        %2958 = vmatprep.subr.bf16.mxu0 %v2703
        %2959 = vmatpush1.bf16.msra.mxu0 %v2702
        %2960 = vmatprep.subr.bf16.mxu0 %v2705
        %2961 = vmatpush1.bf16.msra.mxu0 %v2704
        %2962 = vmatprep.subr.bf16.mxu0 %v2707
        %2963 = vmatpush1.bf16.msra.mxu0 %v2706
        %2964 = vmatprep.subr.bf16.mxu0 %v2709
        %2965 = vmatpush1.bf16.msra.mxu0 %v2708
        %2966 = vmatprep.subr.bf16.mxu0 %v2711
        %2967 = vmatpush1.bf16.msra.mxu0 %v2710
        %2968 = vmatprep.subr.bf16.mxu0 %v2713
        %2969 = vmatpush1.bf16.msra.mxu0 %v2712
        %2970 = vmatprep.subr.bf16.mxu0 %v2715
        %2971 = vmatpush1.bf16.msra.mxu0 %v2714
        %2972 = vmatprep.mubr.bf16.mxu0 %v2285
        %2973 = vmatmul.mubr.bf16.gmra.mrb[0].mxu0 %v2284
        %v2974 = vpop.f32.mrb[0].mxu0
        %v2975 = vadd.f32 0.0, %v2974
        %v2976 = vpop.f32.mrb[0].mxu0
        %v2977 = vadd.f32 0.0, %v2976
        %v2978 = vpop.f32.mrb[0].mxu0
        %v2979 = vpop.f32.mrb[0].mxu0
        %2980 = vdwg.mxu0
        %2981 = vmatprep.subr.bf16.mxu0 %v2717
        %2982 = vmatpush1.bf16.msra.mxu0 %v2716
        %2983 = vmatprep.subr.bf16.mxu0 %v2719
        %2984 = vmatpush1.bf16.msra.mxu0 %v2718
        %2985 = vmatprep.subr.bf16.mxu0 %v2721
        %2986 = vmatpush1.bf16.msra.mxu0 %v2720
        %2987 = vmatprep.subr.bf16.mxu0 %v2723
        %2988 = vmatpush1.bf16.msra.mxu0 %v2722
        %2989 = vmatprep.subr.bf16.mxu0 %v2725
        %2990 = vmatpush1.bf16.msra.mxu0 %v2724
        %2991 = vmatprep.subr.bf16.mxu0 %v2727
        %2992 = vmatpush1.bf16.msra.mxu0 %v2726
        %2993 = vmatprep.subr.bf16.mxu0 %v2729
        %2994 = vmatpush1.bf16.msra.mxu0 %v2728
        %2995 = vmatprep.subr.bf16.mxu0 %v2731
        %2996 = vmatpush1.bf16.msra.mxu0 %v2730
        %2997 = vmatprep.subr.bf16.mxu0 %v2733
        %2998 = vmatpush1.bf16.msra.mxu0 %v2732
        %2999 = vmatprep.subr.bf16.mxu0 %v2735
        %3000 = vmatpush1.bf16.msra.mxu0 %v2734
        %3001 = vmatprep.subr.bf16.mxu0 %v2737
        %3002 = vmatpush1.bf16.msra.mxu0 %v2736
        %3003 = vmatprep.subr.bf16.mxu0 %v2739
        %3004 = vmatpush1.bf16.msra.mxu0 %v2738
        %3005 = vmatprep.subr.bf16.mxu0 %v2741
        %3006 = vmatpush1.bf16.msra.mxu0 %v2740
        %3007 = vmatprep.subr.bf16.mxu0 %v2743
        %3008 = vmatpush1.bf16.msra.mxu0 %v2742
        %3009 = vmatprep.subr.bf16.mxu0 %v2745
        %3010 = vmatpush1.bf16.msra.mxu0 %v2744
        %3011 = vmatprep.subr.bf16.mxu0 %v2747
        %3012 = vmatpush1.bf16.msra.mxu0 %v2746
        %3013 = vmatprep.mubr.bf16.mxu0 %v2287
        %3014 = vmatmul.mubr.bf16.gmra.mrb[0].mxu0 %v2286
        %v3015 = vpop.f32.mrb[0].mxu0
        %v3016 = vadd.f32 %v2975, %v3015
        %v3017 = vpop.f32.mrb[0].mxu0
        %v3018 = vadd.f32 %v2977, %v3017
        %v3019 = vpop.f32.mrb[0].mxu0
        %v3020 = vpop.f32.mrb[0].mxu0
        %3021 = vdwg.mxu0
        %3022 = vmatprep.subr.bf16.mxu0 %v2749
        %3023 = vmatpush1.bf16.msra.mxu0 %v2748
        %3024 = vmatprep.subr.bf16.mxu0 %v2751
        %3025 = vmatpush1.bf16.msra.mxu0 %v2750
        %3026 = vmatprep.subr.bf16.mxu0 %v2753
        %3027 = vmatpush1.bf16.msra.mxu0 %v2752
        %3028 = vmatprep.subr.bf16.mxu0 %v2755
        %3029 = vmatpush1.bf16.msra.mxu0 %v2754
        %3030 = vmatprep.subr.bf16.mxu0 %v2757
        %3031 = vmatpush1.bf16.msra.mxu0 %v2756
        %3032 = vmatprep.subr.bf16.mxu0 %v2759
        %3033 = vmatpush1.bf16.msra.mxu0 %v2758
        %3034 = vmatprep.subr.bf16.mxu0 %v2761
        %3035 = vmatpush1.bf16.msra.mxu0 %v2760
        %3036 = vmatprep.subr.bf16.mxu0 %v2763
        %3037 = vmatpush1.bf16.msra.mxu0 %v2762
        %3038 = vmatprep.subr.bf16.mxu0 %v2765
        %3039 = vmatpush1.bf16.msra.mxu0 %v2764
        %3040 = vmatprep.subr.bf16.mxu0 %v2767
        %3041 = vmatpush1.bf16.msra.mxu0 %v2766
        %3042 = vmatprep.subr.bf16.mxu0 %v2769
        %3043 = vmatpush1.bf16.msra.mxu0 %v2768
        %3044 = vmatprep.subr.bf16.mxu0 %v2771
        %3045 = vmatpush1.bf16.msra.mxu0 %v2770
        %3046 = vmatprep.subr.bf16.mxu0 %v2773
        %3047 = vmatpush1.bf16.msra.mxu0 %v2772
        %3048 = vmatprep.subr.bf16.mxu0 %v2775
        %3049 = vmatpush1.bf16.msra.mxu0 %v2774
        %3050 = vmatprep.subr.bf16.mxu0 %v2777
        %3051 = vmatpush1.bf16.msra.mxu0 %v2776
        %3052 = vmatprep.subr.bf16.mxu0 %v2779
        %3053 = vmatpush1.bf16.msra.mxu0 %v2778
        %3054 = vmatprep.mubr.bf16.mxu0 %v2289
        %3055 = vmatmul.mubr.bf16.gmra.mrb[0].mxu0 %v2288
        %v3056 = vpop.f32.mrb[0].mxu0
        %v3057 = vadd.f32 %v3016, %v3056
        %v3058 = vpop.f32.mrb[0].mxu0
        %v3059 = vadd.f32 %v3018, %v3058
        %v3060 = vpop.f32.mrb[0].mxu0
        %v3061 = vpop.f32.mrb[0].mxu0
        %3062 = vdwg.mxu0
        %3063 = vmatprep.subr.bf16.mxu0 %v2781
        %3064 = vmatpush1.bf16.msra.mxu0 %v2780
        %3065 = vmatprep.subr.bf16.mxu0 %v2783
        %3066 = vmatpush1.bf16.msra.mxu0 %v2782
        %3067 = vmatprep.subr.bf16.mxu0 %v2785
        %3068 = vmatpush1.bf16.msra.mxu0 %v2784
        %3069 = vmatprep.subr.bf16.mxu0 %v2787
        %3070 = vmatpush1.bf16.msra.mxu0 %v2786
        %3071 = vmatprep.subr.bf16.mxu0 %v2789
        %3072 = vmatpush1.bf16.msra.mxu0 %v2788
        %3073 = vmatprep.subr.bf16.mxu0 %v2791
        %3074 = vmatpush1.bf16.msra.mxu0 %v2790
        %3075 = vmatprep.subr.bf16.mxu0 %v2793
        %3076 = vmatpush1.bf16.msra.mxu0 %v2792
        %3077 = vmatprep.subr.bf16.mxu0 %v2795
        %3078 = vmatpush1.bf16.msra.mxu0 %v2794
        %3079 = vmatprep.subr.bf16.mxu0 %v2797
        %3080 = vmatpush1.bf16.msra.mxu0 %v2796
        %3081 = vmatprep.subr.bf16.mxu0 %v2799
        %3082 = vmatpush1.bf16.msra.mxu0 %v2798
        %3083 = vmatprep.subr.bf16.mxu0 %v2801
        %3084 = vmatpush1.bf16.msra.mxu0 %v2800
        %3085 = vmatprep.subr.bf16.mxu0 %v2803
        %3086 = vmatpush1.bf16.msra.mxu0 %v2802
        %3087 = vmatprep.subr.bf16.mxu0 %v2805
        %3088 = vmatpush1.bf16.msra.mxu0 %v2804
        %3089 = vmatprep.subr.bf16.mxu0 %v2807
        %3090 = vmatpush1.bf16.msra.mxu0 %v2806
        %3091 = vmatprep.subr.bf16.mxu0 %v2809
        %3092 = vmatpush1.bf16.msra.mxu0 %v2808
        %3093 = vmatprep.subr.bf16.mxu0 %v2811
        %3094 = vmatpush1.bf16.msra.mxu0 %v2810
        %3095 = vmatprep.mubr.bf16.mxu0 %v2291
        %3096 = vmatmul.mubr.bf16.gmra.mrb[0].mxu0 %v2290
        %v3097 = vpop.f32.mrb[0].mxu0
        %v3098 = vadd.f32 %v3057, %v3097
        %v3099 = vpop.f32.mrb[0].mxu0
        %v3100 = vadd.f32 %v3059, %v3099
        %v3101 = vpop.f32.mrb[0].mxu0
        %v3102 = vpop.f32.mrb[0].mxu0
        %3103 = vdwg.mxu0
        %v3104 = vtanh.pop %v3098
        %v3105 = vtanh.pop %v3100
        %3106 = vst [vmem:[%s558] sm:$0xff] %v3104
        %3107 = vst [vmem:[%s558 + $0x8] sm:$0xff] %v3105
        %s3108 = sand.u32 %s34, 1
        %s3109 = scalar_lea.sflag [#allocation5], %s3108
        %s3110 = sand.u32 %s338, 1
        %s3111 = smul.addr %s3110, 16
        %s3112 = scalar_lea.vmem [#allocation23], %s3111
        // Predicated region
        $region89: #{tpu_custom_call.1} parent=51 // pred_check
          %p3113 = pneg %p242
        $region90: #{tpu_custom_call.1} parent=51 // pred_check_branch
          %3115 = sbr.rel (%p3113) target = $region92
        $region91: #{tpu_custom_call.1} parent=51 // pred_region
          %s3117 = ssub.s32 128, 128
          %3118 = vsyncadd [#allocation5], %s3117
          %s3119 = smul.addr %s38, 128
          %s3120 = scalar_lea.hbm %s8, %s3119
          %s3122 = sshll.u32 [#allocation17], 4
          %s3123 = int_to_ptr.vmem [resolvable:$true] %s3122
          %3125 = dma.vmem_to_hbm [thread:$0]  %s3123, 128, %s3120, [#allocation5]
        $region92: #{tpu_custom_call.1} parent=51 // pred_fallthru
          _
        // Predicated region
        $region93: #{tpu_custom_call.1} parent=51 // pred_check
          %p3126 = pneg %p268
        $region94: #{tpu_custom_call.1} parent=51 // pred_check_branch
          %3128 = sbr.rel (%p3126) target = $region96
        $region95: #{tpu_custom_call.1} parent=51 // pred_region
          %s3130 = ssub.s32 128, 128
          %3131 = vsyncadd [#allocation19], %s3130
          %s3132 = smul.addr %s38, 128
          %s3133 = scalar_lea.hbm %s9, %s3132
          %s3135 = sshll.u32 [#allocation18], 4
          %s3136 = int_to_ptr.vmem [resolvable:$true] %s3135
          %3138 = dma.vmem_to_hbm [thread:$0]  %s3136, 128, %s3133, [#allocation19]
        $region96: #{tpu_custom_call.1} parent=51 // pred_fallthru
          _
        // Predicated region
        $region97: #{tpu_custom_call.1} parent=51 // pred_check
          %p3139 = pneg %p294
        $region98: #{tpu_custom_call.1} parent=51 // pred_check_branch
          %3141 = sbr.rel (%p3139) target = $region100
        $region99: #{tpu_custom_call.1} parent=51 // pred_region
          %s3143 = ssub.s32 128, 128
          %3144 = vsyncadd [#allocation19], %s3143
          %s3145 = smul.addr %s38, 128
          %s3146 = scalar_lea.hbm %s10, %s3145
          %s3148 = sshll.u32 [#allocation20], 4
          %s3149 = int_to_ptr.vmem [resolvable:$true] %s3148
          %3151 = dma.vmem_to_hbm [thread:$0]  %s3149, 128, %s3146, [#allocation19]
        $region100: #{tpu_custom_call.1} parent=51 // pred_fallthru
          _
        // Predicated region
        $region101: #{tpu_custom_call.1} parent=51 // pred_check
          %p3152 = pneg %p320
        $region102: #{tpu_custom_call.1} parent=51 // pred_check_branch
          %3154 = sbr.rel (%p3152) target = $region104
        $region103: #{tpu_custom_call.1} parent=51 // pred_region
          %s3156 = ssub.s32 1024, 1024
          %3157 = vsyncadd [#allocation22], %s3156
          %s3158 = smul.addr %s38, 8
          %s3159 = smul.addr %s3158, 128
          %s3160 = scalar_lea.hbm %s11, %s3159
          %s3162 = sshll.u32 [#allocation21], 4
          %s3163 = int_to_ptr.vmem [resolvable:$true] %s3162
          %3165 = dma.vmem_to_hbm [thread:$0]  %s3163, 1024, %s3160, [#allocation22]
        $region104: #{tpu_custom_call.1} parent=51 // pred_fallthru
          _
        // Predicated region
        $region105: #{tpu_custom_call.1} parent=51 // pred_check
          %p3166 = pneg %p348
        $region106: #{tpu_custom_call.1} parent=51 // pred_check_branch
          %3168 = sbr.rel (%p3166) target = $region108
        $region107: #{tpu_custom_call.1} parent=51 // pred_region
          %s3169 = smul.u32 2, %s39
          %s3171 = ssub.s32 256, 256
          %3172 = vsyncadd %s3109, %s3171
          %s3173 = smul.addr %s38, 8
          %s3174 = sadd.s32 %s3169, %s3173
          %s3175 = smul.addr %s3174, 128
          %s3176 = scalar_lea.hbm %s12, %s3175
          %s3178 = sshll.u32 %s3112, 4
          %s3179 = int_to_ptr.vmem [resolvable:$true] %s3178
          %3181 = dma.vmem_to_hbm [thread:$0]  %s3179, 256, %s3176, %s3109
        $region108: #{tpu_custom_call.1} parent=51 // pred_fallthru
          _
        // Predicated region
        $region109: #{tpu_custom_call.1} parent=51 // pred_check
          %p3182 = pneg %p242
        $region110: #{tpu_custom_call.1} parent=51 // pred_check_branch
          %3184 = sbr.rel (%p3182) target = $region112
        $region111: #{tpu_custom_call.1} parent=51 // pred_region
          %3185 = dma.done [#allocation5], 128
        $region112: #{tpu_custom_call.1} parent=51 // pred_fallthru
          _
        // Predicated region
        $region113: #{tpu_custom_call.1} parent=51 // pred_check
          %p3186 = pneg %p268
        $region114: #{tpu_custom_call.1} parent=51 // pred_check_branch
          %3188 = sbr.rel (%p3186) target = $region116
        $region115: #{tpu_custom_call.1} parent=51 // pred_region
          %3189 = dma.done [#allocation19], 128
        $region116: #{tpu_custom_call.1} parent=51 // pred_fallthru
          _
        // Predicated region
        $region117: #{tpu_custom_call.1} parent=51 // pred_check
          %p3190 = pneg %p294
        $region118: #{tpu_custom_call.1} parent=51 // pred_check_branch
          %3192 = sbr.rel (%p3190) target = $region120
        $region119: #{tpu_custom_call.1} parent=51 // pred_region
          %3193 = dma.done [#allocation19], 128
        $region120: #{tpu_custom_call.1} parent=51 // pred_fallthru
          _
        // Predicated region
        $region121: #{tpu_custom_call.1} parent=51 // pred_check
          %p3194 = pneg %p320
        $region122: #{tpu_custom_call.1} parent=51 // pred_check_branch
          %3196 = sbr.rel (%p3194) target = $region124
        $region123: #{tpu_custom_call.1} parent=51 // pred_region
          %3197 = dma.done [#allocation22], 1024
        $region124: #{tpu_custom_call.1} parent=51 // pred_fallthru
          _
      $region52: #{tpu_custom_call.1} parent=5 // pred_fallthru
        _
      %p3198 = scmp.le.s32.totalorder 2, %s29
      // Predicated region
      $region125: #{tpu_custom_call.1} parent=5 // pred_check
        %p3199 = pneg %p3198
      $region126: #{tpu_custom_call.1} parent=5 // pred_check_branch
        %3201 = sbr.rel (%p3199) target = $region128
      $region127: #{tpu_custom_call.1} parent=5 // pred_region
        %s3202 = ssub.s32 %s29, 2
        // Predicated region
        $region129: #{tpu_custom_call.1} parent=127 // pred_check
          %p3203 = pneg %p354
        $region130: #{tpu_custom_call.1} parent=127 // pred_check_branch
          %3205 = sbr.rel (%p3203) target = $region132
        $region131: #{tpu_custom_call.1} parent=127 // pred_region
          %s3206 = sand.u32 %s35, 1
          %s3207 = scalar_lea.sflag [#allocation5], %s3206
          %s3208 = sand.u32 %s339, 1
          %s3209 = smul.addr %s3208, 16
          %s3210 = scalar_lea.vmem [#allocation23], %s3209
          %3211 = dma.done %s3207, 256
        $region132: #{tpu_custom_call.1} parent=127 // pred_fallthru
          _
      $region128: #{tpu_custom_call.1} parent=5 // pred_fallthru
        _
    $region6: #{tpu_custom_call.1} parent=1 // loop_footer
      %s33 = sadd.s32 1, %s29
    $region7: #{tpu_custom_call.1} parent=1 // loop_footer_branch
      %28 = sbr.rel target = $region3
    $region8: #{tpu_custom_call.1} parent=1 // loop_exit
      _
    %3212 = vsyncpa [#allocation4], 1
    %s3213 = scalar_lea.sflag [#allocation4], 1
    %3214 = vsyncpa %s3213, 1
    %3215 = vsyncpa [#allocation7], 1
    %3216 = vsyncpa [#allocation10], 1
    %3217 = vsyncpa [#allocation13], 1
    %3218 = vsyncpa [#allocation16], 1
    %s3219 = scalar_lea.sflag [#allocation16], 1
    %3220 = vsyncpa %s3219, 1
    %3221 = vsyncpa [#allocation5], 1
    %s3222 = scalar_lea.sflag [#allocation5], 1
    %3223 = vsyncpa %s3222, 1
    %3224 = vsyncpa [#allocation19], 1
    %3225 = vsyncpa [#allocation22], 1

</llo_original>
